<compile_context>
chip_gen: v5e
topology: v5e:2x2
jax: 0.10.0
libtpu: 0.0.40
codegen_flags: <defaults>
</compile_context>

<pallas_src>
import functools
import numpy as np
import jax
import jax.numpy as jnp
from jax.experimental import pallas as pl
from jax.experimental.pallas import tpu as pltpu

# SDR hyper-parameters (module defaults)
ALPHA = 0.25          # unused in forward()
BETA = 0.2            # only enters through param.grad (see TODO above)
ZETA = 0.99
N_BLOCKS = 2
ZETA_RATIO = 0.9


def _zeta_factors(n_params):
    # frac = int(n_blocks * (1 - paramidx / length)) ; zeta_ = zeta * zeta_ratio ** frac
    facs = []
    for idx in range(n_params):
        frac = int(N_BLOCKS * (1.0 - float(idx) / n_params))
        facs.append(float(ZETA * (ZETA_RATIO ** frac)))
    return tuple(facs)


def _sdr_mlp_kernel(zetas, emit_sampled,
                    x_ref, w1_ref, b1_ref, w2_ref, b2_ref,
                    sd_w1_ref, sd_b1_ref, sd_w2_ref, sd_b2_ref,
                    eps_w1_ref, eps_b1_ref, eps_w2_ref, eps_b2_ref,
                    y_ref, nsd_w1_ref, nsd_b1_ref, nsd_w2_ref, nsd_b2_ref,
                    *rest):
    """One grid step = one 128-wide hidden-feature tile."""
    acc_ref = rest[-1]
    if emit_sampled:
        sw1_ref, sb1_ref, sw2_ref, sb2_ref = rest[:-1]

    z_w1, z_b1, z_w2, z_b2 = zetas
    j = pl.program_id(0)
    nj = pl.num_programs(0)

    # _swap_sample_in (param.grad is None):  sds <- zeta_ * sds   (written in place
    # through input_output_aliases; only the current tile of each sds is touched).
    nsd_w1 = z_w1 * sd_w1_ref[...]
    nsd_b1 = z_b1 * sd_b1_ref[...]
    nsd_w2 = z_w2 * sd_w2_ref[...]
    nsd_b2 = z_b2 * sd_b2_ref[...]
    nsd_w1_ref[...] = nsd_w1
    nsd_b1_ref[...] = nsd_b1
    nsd_w2_ref[...] = nsd_w2
    nsd_b2_ref[...] = nsd_b2

    # param <- Normal(param, sds).sample(), fused per tile.
    # (elementwise math stays f32; cast to bf16 only at the MXU boundary)
    w1_s = w1_ref[...] + nsd_w1 * eps_w1_ref[...]
    b1_s = b1_ref[...] + nsd_b1 * eps_b1_ref[...]
    w2_s = w2_ref[...] + nsd_w2 * eps_w2_ref[...]
    if emit_sampled:                      # debug-only outputs for verification
        sw1_ref[...] = w1_s
        sb1_ref[...] = b1_s
        sw2_ref[...] = w2_s

    @pl.when(j == 0)
    def _():
        acc_ref[...] = jnp.zeros_like(acc_ref)

    # hidden tile:  relu(x @ W1_tile + b1_tile)   [standard (K,N) contraction]
    h = jnp.dot(x_ref[...].astype(jnp.bfloat16), w1_s.astype(jnp.bfloat16),
                preferred_element_type=jnp.float32)
    h = jnp.maximum(h + b1_s, 0.0)

    # accumulate this tile's contribution to y = h @ W2
    acc_ref[...] += jnp.dot(h.astype(jnp.bfloat16), w2_s.astype(jnp.bfloat16),
                            preferred_element_type=jnp.float32)

    @pl.when(j == nj - 1)
    def _():
        b2_s = b2_ref[...] + nsd_b2 * eps_b2_ref[...]
        if emit_sampled:
            sb2_ref[...] = b2_s
        y_ref[...] = (acc_ref[...] + b2_s).astype(y_ref.dtype)


def _sdr_pallas(x, params, sds, eps, emit_sampled):
    w1, b1, w2, b2 = params          # w1: [I, H], b1: [1, H], w2: [H, O], b2: [1, O]
    sd_w1, sd_b1, sd_w2, sd_b2 = sds
    eps_w1, eps_b1, eps_w2, eps_b2 = eps
    B, I = x.shape
    _, H = w1.shape
    _, O = w2.shape

    TH = 128 if H % 128 == 0 else H  # hidden tile width (lane-aligned when possible)
    grid = (H // TH,)
    f32 = jnp.float32
    zetas = _zeta_factors(4)

    out_shape = [
        jax.ShapeDtypeStruct((B, O), f32),     # y   (O is a 128-multiple: lane-dense stores)
        jax.ShapeDtypeStruct(w1.shape, f32),   # updated sds (aliased onto the inputs)
        jax.ShapeDtypeStruct(b1.shape, f32),
        jax.ShapeDtypeStruct(w2.shape, f32),
        jax.ShapeDtypeStruct(b2.shape, f32),
    ]
    out_specs = [
        pl.BlockSpec((B, O), lambda j: (0, 0)),
        pl.BlockSpec((I, TH), lambda j: (0, j)),
        pl.BlockSpec((1, TH), lambda j: (0, j)),
        pl.BlockSpec((TH, O), lambda j: (j, 0)),
        pl.BlockSpec((1, O), lambda j: (0, 0)),
    ]
    if emit_sampled:   # debug: also return the sampled parameters (test-only path)
        out_shape += [jax.ShapeDtypeStruct(w1.shape, f32),
                      jax.ShapeDtypeStruct(b1.shape, f32),
                      jax.ShapeDtypeStruct(w2.shape, f32),
                      jax.ShapeDtypeStruct(b2.shape, f32)]
        out_specs += [pl.BlockSpec((I, TH), lambda j: (0, j)),
                      pl.BlockSpec((1, TH), lambda j: (0, j)),
                      pl.BlockSpec((TH, O), lambda j: (j, 0)),
                      pl.BlockSpec((1, O), lambda j: (0, 0))]

    in_specs = [
        pl.BlockSpec((B, I), lambda j: (0, 0)),               # x (resident)
        pl.BlockSpec((I, TH), lambda j: (0, j)),               # w1 tile
        pl.BlockSpec((1, TH), lambda j: (0, j)),               # b1 tile
        pl.BlockSpec((TH, O), lambda j: (j, 0)),               # w2 tile
        pl.BlockSpec((1, O), lambda j: (0, 0)),                # b2
        pl.BlockSpec((I, TH), lambda j: (0, j)),               # sd_w1 tile
        pl.BlockSpec((1, TH), lambda j: (0, j)),               # sd_b1 tile
        pl.BlockSpec((TH, O), lambda j: (j, 0)),               # sd_w2 tile
        pl.BlockSpec((1, O), lambda j: (0, 0)),                # sd_b2
        pl.BlockSpec((I, TH), lambda j: (0, j)),               # eps_w1 tile
        pl.BlockSpec((1, TH), lambda j: (0, j)),               # eps_b1 tile
        pl.BlockSpec((TH, O), lambda j: (j, 0)),               # eps_w2 tile
        pl.BlockSpec((1, O), lambda j: (0, 0)),                # eps_b2
    ]

    outs = pl.pallas_call(
        functools.partial(_sdr_mlp_kernel, zetas, emit_sampled),
        grid=grid,
        in_specs=in_specs,
        out_specs=tuple(out_specs),
        out_shape=tuple(out_shape),
        scratch_shapes=[pltpu.VMEM((B, O), jnp.float32)],     # y accumulator
        # sds inputs (positions 5..8) are updated in place into outputs 1..4
        input_output_aliases={5: 1, 6: 2, 7: 3, 8: 4},
        compiler_params=pltpu.CompilerParams(
            # hidden-tile axis is a reduction for y -> "arbitrary"; at production
            # sizes add a second "parallel" axis over output-feature tiles (megacore).
            dimension_semantics=("arbitrary",),
            vmem_limit_bytes=32 * 1024 * 1024),
    )(x, w1, b1, w2, b2, sd_w1, sd_b1, sd_w2, sd_b2,
      eps_w1, eps_b1, eps_w2, eps_b2)

    y = outs[0]
    new_sds = tuple(outs[1:5])
    sampled = tuple(outs[5:9]) if emit_sampled else None
    return y, new_sds, sampled


@functools.partial(jax.jit, static_argnames=("training", "emit_sampled"))
def sdr_forward(x, params, sds, seed, training=True, emit_sampled=False):
    """SDR.forward: returns (model_output, updated_sds, sampled_params_or_None)."""
    if not training:
        # eval mode: no sds scaling, no sampling -> skip the Pallas kernel entirely.
        w1, b1, w2, b2 = params
        h = jnp.maximum(x @ w1 + b1, 0.0)
        return h @ w2 + b2, sds, None
    # Normal(0,1) noise for each parameter (standard JAX RNG; see TODO about
    # moving this back in-kernel with pltpu.prng_* on a real-TPU-only build).
    key = jax.random.PRNGKey(seed)
    keys = jax.random.split(key, 4)
    eps = tuple(jax.random.normal(k, p.shape, jnp.float32)
                for k, p in zip(keys, params))
    return _sdr_pallas(x, params, sds, eps, emit_sampled)


def _reference_y(x, sampled):
    """Pure-JAX MLP on the sampled parameters (mirrors the kernel's bf16 MXU inputs)."""
    ws1, bs1, ws2, bs2 = sampled
    h = jnp.dot(x.astype(jnp.bfloat16), ws1.astype(jnp.bfloat16),
                preferred_element_type=jnp.float32) + bs1
    h = jnp.maximum(h, 0.0)
    return jnp.dot(h.astype(jnp.bfloat16), ws2.astype(jnp.bfloat16),
                   preferred_element_type=jnp.float32) + bs2


if __name__ == "__main__":
    # small but tile-aligned shapes: batch=8, in=128, hidden=256 (2 tiles), out=128
    B, I, H, O = 8, 128, 256, 128
    key = jax.random.PRNGKey(0)
    kx, kw1, kb1, kw2, kb2, ksd = jax.random.split(key, 6)

    x = jax.random.normal(kx, (B, I), jnp.float32)

    # nn.Linear parameters, stored pre-transposed ([in, out]) for the MXU.
    w1 = jax.random.normal(kw1, (I, H), jnp.float32) * np.sqrt(2.0 / I)
    b1 = jax.random.normal(kb1, (1, H), jnp.float32) * 0.01
    w2 = jax.random.normal(kw2, (H, O), jnp.float32) * np.sqrt(2.0 / H)
    b2 = jax.random.normal(kb2, (1, O), jnp.float32) * 0.01
    params = (w1, b1, w2, b2)

    # SDR state init:  sds = sqrt(2 / prod(shape)) * 0.5 * rand(shape)
    sd_keys = jax.random.split(ksd, 4)
    sds = tuple(
        (np.sqrt(2.0 / np.prod(p.shape)) * 0.5
         * jax.random.uniform(k, p.shape, jnp.float32))
        for k, p in zip(sd_keys, params))
    sds_np = tuple(np.asarray(s) for s in sds)   # host copies for verification

    seed = jnp.int32(12345)
    zetas = _zeta_factors(4)

    # ---- training forward, debug mode (also returns sampled params for checking) ----
    y, new_sds, sampled = sdr_forward(x, params, sds, seed,
                                      training=True, emit_sampled=True)
    y = jax.block_until_ready(y)

    # 1) sds update is exact:  sds <- zeta_ * sds
    for z, s_old, s_new in zip(zetas, sds_np, new_sds):
        np.testing.assert_allclose(np.asarray(s_new), np.float32(z) * s_old,
                                   rtol=1e-6, atol=1e-9)

    # 2) y equals the wrapped MLP evaluated on the sampled parameters (bf16 MXU).
    y_ref = _reference_y(x, sampled)
    np.testing.assert_allclose(np.asarray(y), np.asarray(y_ref), rtol=2e-2, atol=2e-2)

    # 3) sampled params match param + (zeta*sds) * eps (host recomputation)
    host_key = jax.random.PRNGKey(seed)
    host_keys = jax.random.split(host_key, 4)
    for k, z, p, s_old, smp in zip(host_keys, zetas, params, sds_np, sampled):
        eps_h = np.asarray(jax.random.normal(k, p.shape, jnp.float32))
        expect = np.asarray(p) + np.float32(z) * s_old * eps_h
        np.testing.assert_allclose(np.asarray(smp), expect, rtol=1e-5, atol=1e-6)

    # 4) noise sanity: (sampled - param) / new_sd ~ N(0, 1)
    eps_w1 = (np.asarray(sampled[0]) - np.asarray(w1)) / np.asarray(new_sds[0])
    assert abs(float(eps_w1.mean())) < 0.1, "noise mean off"
    assert 0.6 < float(eps_w1.std()) < 1.4, "noise std off"

    # ---- training forward, production mode (no sampled-parameter outputs) ----
    sds2 = tuple(jnp.asarray(s) for s in sds_np)
    y2, new_sds2, _ = sdr_forward(x, params, sds2, seed,
                                  training=True, emit_sampled=False)
    jax.block_until_ready(y2)
    np.testing.assert_allclose(np.asarray(y2), np.asarray(y), rtol=1e-5, atol=1e-5)
    for z, s_old, s_new in zip(zetas, sds_np, new_sds2):
        np.testing.assert_allclose(np.asarray(s_new), np.float32(z) * s_old,
                                   rtol=1e-6, atol=1e-9)

    # ---- eval forward: plain JAX path, params unperturbed, sds unchanged ----
    sds3 = tuple(jnp.asarray(s) for s in sds_np)
    y_eval, sds_eval, _ = sdr_forward(x, params, sds3, seed, training=False)
    jax.block_until_ready(y_eval)
    assert y_eval.shape == (B, O) and np.isfinite(np.asarray(y_eval)).all()
    for s_old, s_new in zip(sds_np, sds_eval):
        np.testing.assert_allclose(np.asarray(s_new), s_old, rtol=0, atol=0)

    print("KERNEL_OK")
</pallas_src>

<mosaic_0001>
module attributes {stable_mosaic.version = 11 : i64} {
  func.func @_sdr_mlp_kernel(%arg0: i32, %arg1: memref<8x128xf32, #tpu.memory_space<vmem>>, %arg2: memref<128x128xf32, #tpu.memory_space<vmem>>, %arg3: memref<1x128xf32, #tpu.memory_space<vmem>>, %arg4: memref<128x128xf32, #tpu.memory_space<vmem>>, %arg5: memref<1x128xf32, #tpu.memory_space<vmem>>, %arg6: memref<128x128xf32, #tpu.memory_space<vmem>>, %arg7: memref<1x128xf32, #tpu.memory_space<vmem>>, %arg8: memref<128x128xf32, #tpu.memory_space<vmem>>, %arg9: memref<1x128xf32, #tpu.memory_space<vmem>>, %arg10: memref<128x128xf32, #tpu.memory_space<vmem>>, %arg11: memref<1x128xf32, #tpu.memory_space<vmem>>, %arg12: memref<128x128xf32, #tpu.memory_space<vmem>>, %arg13: memref<1x128xf32, #tpu.memory_space<vmem>>, %arg14: memref<8x128xf32, #tpu.memory_space<vmem>>, %arg15: memref<128x128xf32, #tpu.memory_space<vmem>>, %arg16: memref<1x128xf32, #tpu.memory_space<vmem>>, %arg17: memref<128x128xf32, #tpu.memory_space<vmem>>, %arg18: memref<1x128xf32, #tpu.memory_space<vmem>>, %arg19: memref<128x128xf32, #tpu.memory_space<vmem>>, %arg20: memref<1x128xf32, #tpu.memory_space<vmem>>, %arg21: memref<128x128xf32, #tpu.memory_space<vmem>>, %arg22: memref<1x128xf32, #tpu.memory_space<vmem>>, %arg23: memref<8x128xf32, #tpu.memory_space<vmem>>) attributes {dimension_semantics = [#tpu.dimension_semantics<arbitrary>], iteration_bounds = array<i64: 2>, scalar_prefetch = 0 : i64, scratch_operands = 1 : i64, tpu.core_type = #tpu.core_type<tc>, window_params = [{pipeline_mode = #tpu.pipeline_mode<synchronous>, transform_indices = @transform_0, window_bounds = array<i64: 8, 128>}, {transform_indices = @transform_1, window_bounds = array<i64: 128, 128>}, {transform_indices = @transform_2, window_bounds = array<i64: 1, 128>}, {transform_indices = @transform_3, window_bounds = array<i64: 128, 128>}, {pipeline_mode = #tpu.pipeline_mode<synchronous>, transform_indices = @transform_4, window_bounds = array<i64: 1, 128>}, {transform_indices = @transform_5, window_bounds = array<i64: 128, 128>}, {transform_indices = @transform_6, window_bounds = array<i64: 1, 128>}, {transform_indices = @transform_7, window_bounds = array<i64: 128, 128>}, {pipeline_mode = #tpu.pipeline_mode<synchronous>, transform_indices = @transform_8, window_bounds = array<i64: 1, 128>}, {transform_indices = @transform_9, window_bounds = array<i64: 128, 128>}, {transform_indices = @transform_10, window_bounds = array<i64: 1, 128>}, {transform_indices = @transform_11, window_bounds = array<i64: 128, 128>}, {pipeline_mode = #tpu.pipeline_mode<synchronous>, transform_indices = @transform_12, window_bounds = array<i64: 1, 128>}, {pipeline_mode = #tpu.pipeline_mode<synchronous>, transform_indices = @transform_13, window_bounds = array<i64: 8, 128>}, {transform_indices = @transform_14, window_bounds = array<i64: 128, 128>}, {transform_indices = @transform_15, window_bounds = array<i64: 1, 128>}, {transform_indices = @transform_16, window_bounds = array<i64: 128, 128>}, {pipeline_mode = #tpu.pipeline_mode<synchronous>, transform_indices = @transform_17, window_bounds = array<i64: 1, 128>}, {transform_indices = @transform_18, window_bounds = array<i64: 128, 128>}, {transform_indices = @transform_19, window_bounds = array<i64: 1, 128>}, {transform_indices = @transform_20, window_bounds = array<i64: 128, 128>}, {pipeline_mode = #tpu.pipeline_mode<synchronous>, transform_indices = @transform_21, window_bounds = array<i64: 1, 128>}]} {
    %c0 = arith.constant 0 : index
    %c0_0 = arith.constant 0 : index
    %0 = vector.load %arg6[%c0, %c0_0] : memref<128x128xf32, #tpu.memory_space<vmem>>, vector<128x128xf32>
    %cst = arith.constant 8.019000e-01 : f32
    %1 = vector.broadcast %cst : f32 to vector<128x128xf32>
    %2 = arith.mulf %1, %0 : vector<128x128xf32>
    %c0_1 = arith.constant 0 : index
    %c0_2 = arith.constant 0 : index
    %3 = vector.load %arg7[%c0_1, %c0_2] : memref<1x128xf32, #tpu.memory_space<vmem>>, vector<1x128xf32>
    %cst_3 = arith.constant 0.890999972 : f32
    %4 = vector.broadcast %cst_3 : f32 to vector<1x128xf32>
    %5 = arith.mulf %4, %3 : vector<1x128xf32>
    %c0_4 = arith.constant 0 : index
    %c0_5 = arith.constant 0 : index
    %6 = vector.load %arg8[%c0_4, %c0_5] : memref<128x128xf32, #tpu.memory_space<vmem>>, vector<128x128xf32>
    %cst_6 = arith.constant 0.890999972 : f32
    %7 = vector.broadcast %cst_6 : f32 to vector<128x128xf32>
    %8 = arith.mulf %7, %6 : vector<128x128xf32>
    %c0_7 = arith.constant 0 : index
    %c0_8 = arith.constant 0 : index
    %9 = vector.load %arg9[%c0_7, %c0_8] : memref<1x128xf32, #tpu.memory_space<vmem>>, vector<1x128xf32>
    %cst_9 = arith.constant 9.900000e-01 : f32
    %10 = vector.broadcast %cst_9 : f32 to vector<1x128xf32>
    %11 = arith.mulf %10, %9 : vector<1x128xf32>
    %c0_10 = arith.constant 0 : index
    %c0_11 = arith.constant 0 : index
    %12 = vector.load %arg15[%c0_10, %c0_11] : memref<128x128xf32, #tpu.memory_space<vmem>>, vector<128x128xf32>
    tpu.vector_store %arg15[%c0_10, %c0_11], %2 {strides = array<i32>} : memref<128x128xf32, #tpu.memory_space<vmem>>, vector<128x128xf32>,
    %c0_12 = arith.constant 0 : index
    %c0_13 = arith.constant 0 : index
    %13 = vector.load %arg16[%c0_12, %c0_13] : memref<1x128xf32, #tpu.memory_space<vmem>>, vector<1x128xf32>
    tpu.vector_store %arg16[%c0_12, %c0_13], %5 {strides = array<i32>} : memref<1x128xf32, #tpu.memory_space<vmem>>, vector<1x128xf32>,
    %c0_14 = arith.constant 0 : index
    %c0_15 = arith.constant 0 : index
    %14 = vector.load %arg17[%c0_14, %c0_15] : memref<128x128xf32, #tpu.memory_space<vmem>>, vector<128x128xf32>
    tpu.vector_store %arg17[%c0_14, %c0_15], %8 {strides = array<i32>} : memref<128x128xf32, #tpu.memory_space<vmem>>, vector<128x128xf32>,
    %c0_16 = arith.constant 0 : index
    %c0_17 = arith.constant 0 : index
    %15 = vector.load %arg18[%c0_16, %c0_17] : memref<1x128xf32, #tpu.memory_space<vmem>>, vector<1x128xf32>
    tpu.vector_store %arg18[%c0_16, %c0_17], %11 {strides = array<i32>} : memref<1x128xf32, #tpu.memory_space<vmem>>, vector<1x128xf32>,
    %c0_18 = arith.constant 0 : index
    %c0_19 = arith.constant 0 : index
    %16 = vector.load %arg2[%c0_18, %c0_19] : memref<128x128xf32, #tpu.memory_space<vmem>>, vector<128x128xf32>
    %c0_20 = arith.constant 0 : index
    %c0_21 = arith.constant 0 : index
    %17 = vector.load %arg10[%c0_20, %c0_21] : memref<128x128xf32, #tpu.memory_space<vmem>>, vector<128x128xf32>
    %18 = arith.mulf %2, %17 : vector<128x128xf32>
    %19 = arith.addf %16, %18 : vector<128x128xf32>
    %c0_22 = arith.constant 0 : index
    %c0_23 = arith.constant 0 : index
    %20 = vector.load %arg3[%c0_22, %c0_23] : memref<1x128xf32, #tpu.memory_space<vmem>>, vector<1x128xf32>
    %c0_24 = arith.constant 0 : index
    %c0_25 = arith.constant 0 : index
    %21 = vector.load %arg11[%c0_24, %c0_25] : memref<1x128xf32, #tpu.memory_space<vmem>>, vector<1x128xf32>
    %22 = arith.mulf %5, %21 : vector<1x128xf32>
    %23 = arith.addf %20, %22 : vector<1x128xf32>
    %c0_26 = arith.constant 0 : index
    %c0_27 = arith.constant 0 : index
    %24 = vector.load %arg4[%c0_26, %c0_27] : memref<128x128xf32, #tpu.memory_space<vmem>>, vector<128x128xf32>
    %c0_28 = arith.constant 0 : index
    %c0_29 = arith.constant 0 : index
    %25 = vector.load %arg12[%c0_28, %c0_29] : memref<128x128xf32, #tpu.memory_space<vmem>>, vector<128x128xf32>
    %26 = arith.mulf %8, %25 : vector<128x128xf32>
    %27 = arith.addf %24, %26 : vector<128x128xf32>
    %c0_30 = arith.constant 0 : index
    %c0_31 = arith.constant 0 : index
    %28 = vector.load %arg19[%c0_30, %c0_31] : memref<128x128xf32, #tpu.memory_space<vmem>>, vector<128x128xf32>
    tpu.vector_store %arg19[%c0_30, %c0_31], %19 {strides = array<i32>} : memref<128x128xf32, #tpu.memory_space<vmem>>, vector<128x128xf32>,
    %c0_32 = arith.constant 0 : index
    %c0_33 = arith.constant 0 : index
    %29 = vector.load %arg20[%c0_32, %c0_33] : memref<1x128xf32, #tpu.memory_space<vmem>>, vector<1x128xf32>
    tpu.vector_store %arg20[%c0_32, %c0_33], %23 {strides = array<i32>} : memref<1x128xf32, #tpu.memory_space<vmem>>, vector<1x128xf32>,
    %c0_34 = arith.constant 0 : index
    %c0_35 = arith.constant 0 : index
    %30 = vector.load %arg21[%c0_34, %c0_35] : memref<128x128xf32, #tpu.memory_space<vmem>>, vector<128x128xf32>
    tpu.vector_store %arg21[%c0_34, %c0_35], %27 {strides = array<i32>} : memref<128x128xf32, #tpu.memory_space<vmem>>, vector<128x128xf32>,
    %c0_i32 = arith.constant 0 : i32
    %31 = arith.cmpi eq, %arg0, %c0_i32 : i32
    %32 = arith.extui %31 : i1 to i32
    %c0_i32_36 = arith.constant 0 : i32
    %33 = arith.cmpi ne, %32, %c0_i32_36 : i32
    scf.if %33 {
      %cst_47 = arith.constant 0.000000e+00 : f32
      %51 = vector.broadcast %cst_47 : f32 to vector<8x128xf32>
      %c0_48 = arith.constant 0 : index
      %c0_49 = arith.constant 0 : index
      %52 = vector.load %arg23[%c0_48, %c0_49] : memref<8x128xf32, #tpu.memory_space<vmem>>, vector<8x128xf32>
      tpu.vector_store %arg23[%c0_48, %c0_49], %51 {strides = array<i32>} : memref<8x128xf32, #tpu.memory_space<vmem>>, vector<8x128xf32>,
    } else {
    }
    %c0_37 = arith.constant 0 : index
    %c0_38 = arith.constant 0 : index
    %34 = vector.load %arg1[%c0_37, %c0_38] : memref<8x128xf32, #tpu.memory_space<vmem>>, vector<8x128xf32>
    %35 = arith.truncf %34 : vector<8x128xf32> to vector<8x128xbf16>
    %36 = arith.truncf %19 : vector<128x128xf32> to vector<128x128xbf16>
    %cst_39 = arith.constant dense<0.000000e+00> : vector<8x128xf32>
    %37 = tpu.matmul %35, %36, %cst_39 {dimension_numbers = #tpu.dot_dimension_numbers<[1], [0], [0], [1], [0, 0, 1, 1], [], []>} : vector<8x128xbf16>, vector<128x128xbf16>, vector<8x128xf32> -> vector<8x128xf32>
    %38 = vector.broadcast %23 : vector<1x128xf32> to vector<8x128xf32>
    %39 = arith.addf %37, %38 : vector<8x128xf32>
    %cst_40 = arith.constant 0.000000e+00 : f32
    %40 = vector.broadcast %cst_40 : f32 to vector<8x128xf32>
    %41 = arith.maximumf %39, %40 : vector<8x128xf32>
    %c0_41 = arith.constant 0 : index
    %c0_42 = arith.constant 0 : index
    %42 = vector.load %arg23[%c0_41, %c0_42] : memref<8x128xf32, #tpu.memory_space<vmem>>, vector<8x128xf32>
    %43 = arith.truncf %41 : vector<8x128xf32> to vector<8x128xbf16>
    %44 = arith.truncf %27 : vector<128x128xf32> to vector<128x128xbf16>
    %cst_43 = arith.constant dense<0.000000e+00> : vector<8x128xf32>
    %45 = tpu.matmul %43, %44, %cst_43 {dimension_numbers = #tpu.dot_dimension_numbers<[1], [0], [0], [1], [0, 0, 1, 1], [], []>} : vector<8x128xbf16>, vector<128x128xbf16>, vector<8x128xf32> -> vector<8x128xf32>
    %46 = arith.addf %42, %45 : vector<8x128xf32>
    %c0_44 = arith.constant 0 : index
    %c0_45 = arith.constant 0 : index
    %47 = vector.load %arg23[%c0_44, %c0_45] : memref<8x128xf32, #tpu.memory_space<vmem>>, vector<8x128xf32>
    tpu.vector_store %arg23[%c0_44, %c0_45], %46 {strides = array<i32>} : memref<8x128xf32, #tpu.memory_space<vmem>>, vector<8x128xf32>,
    %c1_i32 = arith.constant 1 : i32
    %48 = arith.cmpi eq, %arg0, %c1_i32 : i32
    %49 = arith.extui %48 : i1 to i32
    %c0_i32_46 = arith.constant 0 : i32
    %50 = arith.cmpi ne, %49, %c0_i32_46 : i32
    scf.if %50 {
      %c0_47 = arith.constant 0 : index
      %c0_48 = arith.constant 0 : index
      %51 = vector.load %arg5[%c0_47, %c0_48] : memref<1x128xf32, #tpu.memory_space<vmem>>, vector<1x128xf32>
      %c0_49 = arith.constant 0 : index
      %c0_50 = arith.constant 0 : index
      %52 = vector.load %arg13[%c0_49, %c0_50] : memref<1x128xf32, #tpu.memory_space<vmem>>, vector<1x128xf32>
      %53 = arith.mulf %11, %52 : vector<1x128xf32>
      %54 = arith.addf %51, %53 : vector<1x128xf32>
      %c0_51 = arith.constant 0 : index
      %c0_52 = arith.constant 0 : index
      %55 = vector.load %arg22[%c0_51, %c0_52] : memref<1x128xf32, #tpu.memory_space<vmem>>, vector<1x128xf32>
      tpu.vector_store %arg22[%c0_51, %c0_52], %54 {strides = array<i32>} : memref<1x128xf32, #tpu.memory_space<vmem>>, vector<1x128xf32>,
      %c0_53 = arith.constant 0 : index
      %c0_54 = arith.constant 0 : index
      %56 = vector.load %arg23[%c0_53, %c0_54] : memref<8x128xf32, #tpu.memory_space<vmem>>, vector<8x128xf32>
      %57 = vector.broadcast %54 : vector<1x128xf32> to vector<8x128xf32>
      %58 = arith.addf %56, %57 : vector<8x128xf32>
      %c0_55 = arith.constant 0 : index
      %c0_56 = arith.constant 0 : index
      %59 = vector.load %arg14[%c0_55, %c0_56] : memref<8x128xf32, #tpu.memory_space<vmem>>, vector<8x128xf32>
      tpu.vector_store %arg14[%c0_55, %c0_56], %58 {strides = array<i32>} : memref<8x128xf32, #tpu.memory_space<vmem>>, vector<8x128xf32>,
    } else {
    }
    return
  }
  func.func @transform_0(%arg0: i32) -> (i32, i32) {
    %c0_i32 = arith.constant 0 : i32
    %c0_i32_0 = arith.constant 0 : i32
    %c0_i32_1 = arith.constant 0 : i32
    return %c0_i32, %c0_i32_0 : i32, i32
  }
  func.func @transform_1(%arg0: i32) -> (i32, i32) {
    %c0_i32 = arith.constant 0 : i32
    %c0_i32_0 = arith.constant 0 : i32
    return %c0_i32, %arg0 : i32, i32
  }
  func.func @transform_2(%arg0: i32) -> (i32, i32) {
    %c0_i32 = arith.constant 0 : i32
    %c0_i32_0 = arith.constant 0 : i32
    return %c0_i32, %arg0 : i32, i32
  }
  func.func @transform_3(%arg0: i32) -> (i32, i32) {
    %c0_i32 = arith.constant 0 : i32
    %c0_i32_0 = arith.constant 0 : i32
    return %arg0, %c0_i32 : i32, i32
  }
  func.func @transform_4(%arg0: i32) -> (i32, i32) {
    %c0_i32 = arith.constant 0 : i32
    %c0_i32_0 = arith.constant 0 : i32
    %c0_i32_1 = arith.constant 0 : i32
    return %c0_i32, %c0_i32_0 : i32, i32
  }
  func.func @transform_5(%arg0: i32) -> (i32, i32) {
    %c0_i32 = arith.constant 0 : i32
    %c0_i32_0 = arith.constant 0 : i32
    return %c0_i32, %arg0 : i32, i32
  }
  func.func @transform_6(%arg0: i32) -> (i32, i32) {
    %c0_i32 = arith.constant 0 : i32
    %c0_i32_0 = arith.constant 0 : i32
    return %c0_i32, %arg0 : i32, i32
  }
  func.func @transform_7(%arg0: i32) -> (i32, i32) {
    %c0_i32 = arith.constant 0 : i32
    %c0_i32_0 = arith.constant 0 : i32
    return %arg0, %c0_i32 : i32, i32
  }
  func.func @transform_8(%arg0: i32) -> (i32, i32) {
    %c0_i32 = arith.constant 0 : i32
    %c0_i32_0 = arith.constant 0 : i32
    %c0_i32_1 = arith.constant 0 : i32
    return %c0_i32, %c0_i32_0 : i32, i32
  }
  func.func @transform_9(%arg0: i32) -> (i32, i32) {
    %c0_i32 = arith.constant 0 : i32
    %c0_i32_0 = arith.constant 0 : i32
    return %c0_i32, %arg0 : i32, i32
  }
  func.func @transform_10(%arg0: i32) -> (i32, i32) {
    %c0_i32 = arith.constant 0 : i32
    %c0_i32_0 = arith.constant 0 : i32
    return %c0_i32, %arg0 : i32, i32
  }
  func.func @transform_11(%arg0: i32) -> (i32, i32) {
    %c0_i32 = arith.constant 0 : i32
    %c0_i32_0 = arith.constant 0 : i32
    return %arg0, %c0_i32 : i32, i32
  }
  func.func @transform_12(%arg0: i32) -> (i32, i32) {
    %c0_i32 = arith.constant 0 : i32
    %c0_i32_0 = arith.constant 0 : i32
    %c0_i32_1 = arith.constant 0 : i32
    return %c0_i32, %c0_i32_0 : i32, i32
  }
  func.func @transform_13(%arg0: i32) -> (i32, i32) {
    %c0_i32 = arith.constant 0 : i32
    %c0_i32_0 = arith.constant 0 : i32
    %c0_i32_1 = arith.constant 0 : i32
    return %c0_i32, %c0_i32_0 : i32, i32
  }
  func.func @transform_14(%arg0: i32) -> (i32, i32) {
    %c0_i32 = arith.constant 0 : i32
    %c0_i32_0 = arith.constant 0 : i32
    return %c0_i32, %arg0 : i32, i32
  }
  func.func @transform_15(%arg0: i32) -> (i32, i32) {
    %c0_i32 = arith.constant 0 : i32
    %c0_i32_0 = arith.constant 0 : i32
    return %c0_i32, %arg0 : i32, i32
  }
  func.func @transform_16(%arg0: i32) -> (i32, i32) {
    %c0_i32 = arith.constant 0 : i32
    %c0_i32_0 = arith.constant 0 : i32
    return %arg0, %c0_i32 : i32, i32
  }
  func.func @transform_17(%arg0: i32) -> (i32, i32) {
    %c0_i32 = arith.constant 0 : i32
    %c0_i32_0 = arith.constant 0 : i32
    %c0_i32_1 = arith.constant 0 : i32
    return %c0_i32, %c0_i32_0 : i32, i32
  }
  func.func @transform_18(%arg0: i32) -> (i32, i32) {
    %c0_i32 = arith.constant 0 : i32
    %c0_i32_0 = arith.constant 0 : i32
    return %c0_i32, %arg0 : i32, i32
  }
  func.func @transform_19(%arg0: i32) -> (i32, i32) {
    %c0_i32 = arith.constant 0 : i32
    %c0_i32_0 = arith.constant 0 : i32
    return %c0_i32, %arg0 : i32, i32
  }
  func.func @transform_20(%arg0: i32) -> (i32, i32) {
    %c0_i32 = arith.constant 0 : i32
    %c0_i32_0 = arith.constant 0 : i32
    return %arg0, %c0_i32 : i32, i32
  }
  func.func @transform_21(%arg0: i32) -> (i32, i32) {
    %c0_i32 = arith.constant 0 : i32
    %c0_i32_0 = arith.constant 0 : i32
    %c0_i32_1 = arith.constant 0 : i32
    return %c0_i32, %c0_i32_0 : i32, i32
  }
}

</mosaic_0001>

<llo_original>
// kernel: sdr_forward.3
$region0: #{sdr_forward.3}
  #allocation0 [shape = 'u32[]', space=smem, size = 0x4, offset = 0x4, fixed_abs, tag = 'smem constant byte address 0x4 - core index']
  #allocation1 [shape = 'u32[72,128]{1,0:T(1,128)}', space=vmem, size = 0x9000, scoped, tag = 'internal scratch']
  #allocation2 [shape = 'f32[8,128]{1,0:T(8,128)}', space=vmem, size = 0x1000, scoped, tag = 'scratch operand']
  %s0 = inlined_call_operand.vmem [shape: f32[8,128], index: 0, kind: input, shape index: {}]
  %s1 = inlined_call_operand.vmem [shape: f32[128,256], index: 1, kind: input, shape index: {}]
  %s2 = inlined_call_operand.vmem [shape: f32[1,256], index: 2, kind: input, shape index: {}]
  %s3 = inlined_call_operand.vmem [shape: f32[256,128], index: 3, kind: input, shape index: {}]
  %s4 = inlined_call_operand.vmem [shape: f32[1,128], index: 4, kind: input, shape index: {}]
  %s5 = inlined_call_operand.hbm [shape: f32[128,256], index: 5, kind: input, shape index: {}, may-alias: {5,14}]
  %s6 = inlined_call_operand.hbm [shape: f32[1,256], index: 6, kind: input, shape index: {}, may-alias: {6,15}]
  %s7 = inlined_call_operand.hbm [shape: f32[256,128], index: 7, kind: input, shape index: {}, may-alias: {7,16}]
  %s8 = inlined_call_operand.hbm [shape: f32[1,128], index: 8, kind: input, shape index: {}, may-alias: {8,17}]
  %s9 = inlined_call_operand.vmem [shape: f32[128,256], index: 9, kind: input, shape index: {}]
  %s10 = inlined_call_operand.vmem [shape: f32[1,256], index: 10, kind: input, shape index: {}]
  %s11 = inlined_call_operand.vmem [shape: f32[256,128], index: 11, kind: input, shape index: {}]
  %s12 = inlined_call_operand.vmem [shape: f32[1,128], index: 12, kind: input, shape index: {}]
  %s13 = inlined_call_operand.hbm [shape: f32[8,128], index: 13, kind: output, shape index: {0}]
  %s14 = inlined_call_operand.hbm [shape: f32[128,256], index: 14, kind: output, shape index: {1}, may-alias: {5,14}]
  %s15 = inlined_call_operand.hbm [shape: f32[1,256], index: 15, kind: output, shape index: {2}, may-alias: {6,15}]
  %s16 = inlined_call_operand.hbm [shape: f32[256,128], index: 16, kind: output, shape index: {3}, may-alias: {7,16}]
  %s17 = inlined_call_operand.hbm [shape: f32[1,128], index: 17, kind: output, shape index: {4}, may-alias: {8,17}]
  %s18 = inlined_call_operand.hbm [shape: f32[128,256], index: 18, kind: output, shape index: {5}]
  %s19 = inlined_call_operand.hbm [shape: f32[1,256], index: 19, kind: output, shape index: {6}]
  %s20 = inlined_call_operand.hbm [shape: f32[256,128], index: 20, kind: output, shape index: {7}]
  %s21 = inlined_call_operand.hbm [shape: f32[1,128], index: 21, kind: output, shape index: {8}]
  %22 = xla_tuple %s13, %s14, %s15, %s16, %s17, %s18, %s19, %s20, %s21
  %s23 = sld [smem:[#allocation0]]
  $region249: #{sdr_forward.3} parent=0
    _
  %s25 = ssub.s32 1, %s23
  %s26 = scalar_select 0, %s25, %s23
  $region1: #{sdr_forward.3} parent=0
    #allocation3 [shape = 'u8[131072]{0}', space=vmem, size = 0x20000, scoped, tag = 'input window, operand 1']
    #allocation4 [shape = 'u8[131072]{0}', space=vmem, size = 0x20000, scoped, tag = 'input window, operand 5']
    #allocation5 [shape = 's32[2]{0}', space=sflag, size = 0x8, scoped, tag = 'scoped memory for sdr_forward.3']
    #allocation6 [shape = 's32[2]{0}', space=sflag, size = 0x8, scoped, tag = 'scoped memory for sdr_forward.3']
    #allocation7 [shape = 'u8[1024]{0}', space=vmem, size = 0x400, scoped, tag = 'input window, operand 6']
    #allocation8 [shape = 's32[2]{0}', space=sflag, size = 0x8, scoped, tag = 'scoped memory for sdr_forward.3']
    #allocation9 [shape = 'u8[131072]{0}', space=vmem, size = 0x20000, scoped, tag = 'input window, operand 7']
    #allocation10 [shape = 'u8[512]{0}', space=vmem, size = 0x400, scoped, tag = 'input window, operand 8, single buffered']
    #allocation11 [shape = 's32[1]{0}', space=sflag, size = 0x4, scoped, tag = 'scoped memory for sdr_forward.3']
    #allocation12 [shape = 'u8[131072]{0}', space=vmem, size = 0x20000, scoped, tag = 'input window, operand 9']
    #allocation13 [shape = 'u8[4096]{0}', space=vmem, size = 0x1000, scoped, tag = 'output window, operand 0, single buffered']
    #allocation14 [shape = 'u8[131072]{0}', space=vmem, size = 0x20000, scoped, tag = 'output window, operand 1']
    #allocation15 [shape = 's32[2]{0}', space=sflag, size = 0x8, scoped, tag = 'scoped memory for sdr_forward.3']
    #allocation16 [shape = 'u8[1024]{0}', space=vmem, size = 0x400, scoped, tag = 'output window, operand 2']
    #allocation17 [shape = 'u8[131072]{0}', space=vmem, size = 0x20000, scoped, tag = 'output window, operand 3']
    #allocation18 [shape = 's32[2]{0}', space=sflag, size = 0x8, scoped, tag = 'scoped memory for sdr_forward.3']
    #allocation19 [shape = 'u8[512]{0}', space=vmem, size = 0x400, scoped, tag = 'output window, operand 4, single buffered']
    #allocation20 [shape = 'u8[131072]{0}', space=vmem, size = 0x20000, scoped, tag = 'output window, operand 5']
    #allocation21 [shape = 's32[2]{0}', space=sflag, size = 0x8, scoped, tag = 'scoped memory for sdr_forward.3']
    #allocation22 [shape = 'u8[1024]{0}', space=vmem, size = 0x400, scoped, tag = 'output window, operand 6']
    #allocation23 [shape = 'u8[131072]{0}', space=vmem, size = 0x20000, scoped, tag = 'output window, operand 7']
    #allocation24 [shape = 's32[2]{0}', space=sflag, size = 0x8, scoped, tag = 'scoped memory for sdr_forward.3']
    #allocation25 [shape = 'u8[512]{0}', space=vmem, size = 0x400, scoped, tag = 'output window, operand 8, single buffered']
    %27 = vsyncpa [#allocation5], 0
    %s28 = scalar_lea.sflag [#allocation5], 1
    %29 = vsyncpa %s28, 0
    %30 = vsyncpa [#allocation8], 0
    %s31 = scalar_lea.sflag [#allocation8], 1
    %32 = vsyncpa %s31, 0
    %33 = vsyncpa [#allocation11], 0
    %34 = vsyncpa [#allocation6], 0
    %35 = vsyncpa [#allocation15], 0
    %s36 = scalar_lea.sflag [#allocation15], 1
    %37 = vsyncpa %s36, 0
    %38 = vsyncpa [#allocation18], 0
    %s39 = scalar_lea.sflag [#allocation18], 1
    %40 = vsyncpa %s39, 0
    %41 = vsyncpa [#allocation21], 0
    %s42 = scalar_lea.sflag [#allocation21], 1
    %43 = vsyncpa %s42, 0
    %44 = vsyncpa [#allocation24], 0
    %s45 = scalar_lea.sflag [#allocation24], 1
    %46 = vsyncpa %s45, 0
    loop: start=0, step=1, limit=4
    $region2: #{sdr_forward.3} parent=1 // loop_pre_header
      _
    $region3: #{sdr_forward.3} parent=1 // loop_header
      %s48 = sphi 0, %s52
      %p49 = scmp.ge.s32.totalorder %s48, 4
      %s56 = sphi 0, %s56
      %s58 = sphi 0, %s56
      %s59 = sphi 0, %s58
      %s73 = sphi 0, %s59
      %s79 = sphi 0, %s81
      %s82 = sphi 0, %s79
      %s83 = sphi 0, %s82
      %s99 = sphi 0, %s83
      %s105 = sphi 0, %s107
      %s108 = sphi 0, %s105
      %s109 = sphi 0, %s108
      %s125 = sphi 0, %s109
      %s131 = sphi 0, %s133
      %s134 = sphi 0, %s131
      %s135 = sphi 0, %s134
      %s151 = sphi 0, %s135
      %s155 = sphi 0, %s155
      %s157 = sphi 0, %s155
      %s158 = sphi 0, %s157
      %s172 = sphi 0, %s158
      %s178 = sphi 0, %s180
      %s181 = sphi 0, %s178
      %s182 = sphi 0, %s181
      %s198 = sphi 0, %s182
      %s204 = sphi 0, %s206
      %s207 = sphi 0, %s204
      %s208 = sphi 0, %s207
      %s224 = sphi 0, %s208
      %s230 = sphi 0, %s232
      %s233 = sphi 0, %s230
      %s234 = sphi 0, %s233
      %s250 = sphi 0, %s234
      %s254 = sphi 0, %s254
      %s256 = sphi 0, %s254
      %s257 = sphi 0, %s256
      %s271 = sphi 0, %s257
      %s277 = sphi 0, %s279
      %s280 = sphi 0, %s277
      %s281 = sphi 0, %s280
      %s297 = sphi 0, %s281
      %s303 = sphi 0, %s305
      %s306 = sphi 0, %s303
      %s307 = sphi 0, %s306
      %s323 = sphi 0, %s307
      %s329 = sphi 0, %s331
      %s332 = sphi 0, %s329
      %s333 = sphi 0, %s332
      %s349 = sphi 0, %s333
      %s353 = sphi 0, %s353
      %s355 = sphi 0, %s353
      %s356 = sphi 0, %s355
      %s370 = sphi 0, %s356
      %s374 = sphi 0, %s374
      %s376 = sphi 0, %s374
      %s377 = sphi 0, %s376
      %s391 = sphi 0, %s377
      %s397 = sphi 0, %s399
      %s400 = sphi 0, %s397
      %s401 = sphi 0, %s400
      %s417 = sphi 0, %s401
      %s423 = sphi 0, %s425
      %s426 = sphi 0, %s423
      %s427 = sphi 0, %s426
      %s443 = sphi 0, %s427
      %s449 = sphi 0, %s451
      %s452 = sphi 0, %s449
      %s453 = sphi 0, %s452
      %s469 = sphi 0, %s453
      %s473 = sphi 0, %s473
      %s475 = sphi 0, %s473
      %s476 = sphi 0, %s475
      %s490 = sphi 0, %s476
      %s496 = sphi 0, %s498
      %s499 = sphi 0, %s496
      %s500 = sphi 0, %s499
      %s516 = sphi 0, %s500
      %s522 = sphi 0, %s524
      %s525 = sphi 0, %s522
      %s526 = sphi 0, %s525
      %s542 = sphi 0, %s526
      %s548 = sphi 0, %s550
      %s551 = sphi 0, %s548
      %s552 = sphi 0, %s551
      %s568 = sphi 0, %s552
      %s572 = sphi 0, %s572
      %s574 = sphi 0, %s572
      %s575 = sphi 0, %s574
      %s589 = sphi 0, %s575
    $region4: #{sdr_forward.3} parent=1 // loop_header_branch
      %51 = sbr.rel (%p49) target = $region8
    $region5: #{sdr_forward.3} parent=1 // loop_body
      %s53 = ssub.s32 %s48, 1
      %s54 = ssub.s32 %s48, 2
      %s55 = sadd.s32 %s48, 1
      %s57 = sadd.s32 %s56, 1
      %p60 = scmp.eq.s32.totalorder %s48, 1
      %p61 = scmp.ne.s32.totalorder %s56, %s58
      %p62 = scmp.eq.s32.totalorder %s48, 0
      %p63 = por %p61, %p62
      %p64 = scmp.ne.s32.totalorder %s56, %s58
      %p65 = scmp.eq.s32.totalorder %s53, 1
      %p66 = por %p64, %p65
      %p67 = scmp.ne.s32.totalorder %s58, %s59
      %p68 = scmp.eq.s32.totalorder %s53, 0
      %p69 = por %p67, %p68
      %p70 = scmp.ne.s32.totalorder %s58, %s59
      %p71 = scmp.eq.s32.totalorder %s54, 1
      %p72 = por %p70, %p71
      %p74 = scmp.ne.s32.totalorder %s59, %s73
      %p75 = scmp.eq.s32.totalorder %s54, 0
      %p76 = por %p74, %p75
      %s77 = ssub.s32 %s48, %s55
      %p78 = scmp.eq.s32.totalorder %s77, 0
      %s80 = sadd.s32 %s79, 1
      %s81 = scalar_select %p78, %s79, %s80
      %p84 = pneg %p78
      %p85 = scmp.eq.s32.totalorder %s48, 1
      %p86 = por %p84, %p85
      %p87 = scmp.ne.s32.totalorder %s79, %s82
      %p88 = scmp.eq.s32.totalorder %s48, 0
      %p89 = por %p87, %p88
      %p90 = scmp.ne.s32.totalorder %s79, %s82
      %p91 = scmp.eq.s32.totalorder %s53, 1
      %p92 = por %p90, %p91
      %p93 = scmp.ne.s32.totalorder %s82, %s83
      %p94 = scmp.eq.s32.totalorder %s53, 0
      %p95 = por %p93, %p94
      %p96 = scmp.ne.s32.totalorder %s82, %s83
      %p97 = scmp.eq.s32.totalorder %s54, 1
      %p98 = por %p96, %p97
      %p100 = scmp.ne.s32.totalorder %s83, %s99
      %p101 = scmp.eq.s32.totalorder %s54, 0
      %p102 = por %p100, %p101
      %s103 = ssub.s32 %s48, %s55
      %p104 = scmp.eq.s32.totalorder %s103, 0
      %s106 = sadd.s32 %s105, 1
      %s107 = scalar_select %p104, %s105, %s106
      %p110 = pneg %p104
      %p111 = scmp.eq.s32.totalorder %s48, 1
      %p112 = por %p110, %p111
      %p113 = scmp.ne.s32.totalorder %s105, %s108
      %p114 = scmp.eq.s32.totalorder %s48, 0
      %p115 = por %p113, %p114
      %p116 = scmp.ne.s32.totalorder %s105, %s108
      %p117 = scmp.eq.s32.totalorder %s53, 1
      %p118 = por %p116, %p117
      %p119 = scmp.ne.s32.totalorder %s108, %s109
      %p120 = scmp.eq.s32.totalorder %s53, 0
      %p121 = por %p119, %p120
      %p122 = scmp.ne.s32.totalorder %s108, %s109
      %p123 = scmp.eq.s32.totalorder %s54, 1
      %p124 = por %p122, %p123
      %p126 = scmp.ne.s32.totalorder %s109, %s125
      %p127 = scmp.eq.s32.totalorder %s54, 0
      %p128 = por %p126, %p127
      %s129 = ssub.s32 %s48, %s55
      %p130 = scmp.eq.s32.totalorder %s129, 0
      %s132 = sadd.s32 %s131, 1
      %s133 = scalar_select %p130, %s131, %s132
      %p136 = pneg %p130
      %p137 = scmp.eq.s32.totalorder %s48, 1
      %p138 = por %p136, %p137
      %p139 = scmp.ne.s32.totalorder %s131, %s134
      %p140 = scmp.eq.s32.totalorder %s48, 0
      %p141 = por %p139, %p140
      %p142 = scmp.ne.s32.totalorder %s131, %s134
      %p143 = scmp.eq.s32.totalorder %s53, 1
      %p144 = por %p142, %p143
      %p145 = scmp.ne.s32.totalorder %s134, %s135
      %p146 = scmp.eq.s32.totalorder %s53, 0
      %p147 = por %p145, %p146
      %p148 = scmp.ne.s32.totalorder %s134, %s135
      %p149 = scmp.eq.s32.totalorder %s54, 1
      %p150 = por %p148, %p149
      %p152 = scmp.ne.s32.totalorder %s135, %s151
      %p153 = scmp.eq.s32.totalorder %s54, 0
      %p154 = por %p152, %p153
      %s156 = sadd.s32 %s155, 1
      %p159 = scmp.eq.s32.totalorder %s48, 1
      %p160 = scmp.ne.s32.totalorder %s155, %s157
      %p161 = scmp.eq.s32.totalorder %s48, 0
      %p162 = por %p160, %p161
      %p163 = scmp.ne.s32.totalorder %s155, %s157
      %p164 = scmp.eq.s32.totalorder %s53, 1
      %p165 = por %p163, %p164
      %p166 = scmp.ne.s32.totalorder %s157, %s158
      %p167 = scmp.eq.s32.totalorder %s53, 0
      %p168 = por %p166, %p167
      %p169 = scmp.ne.s32.totalorder %s157, %s158
      %p170 = scmp.eq.s32.totalorder %s54, 1
      %p171 = por %p169, %p170
      %p173 = scmp.ne.s32.totalorder %s158, %s172
      %p174 = scmp.eq.s32.totalorder %s54, 0
      %p175 = por %p173, %p174
      %s176 = ssub.s32 %s48, %s55
      %p177 = scmp.eq.s32.totalorder %s176, 0
      %s179 = sadd.s32 %s178, 1
      %s180 = scalar_select %p177, %s178, %s179
      %p183 = pneg %p177
      %p184 = scmp.eq.s32.totalorder %s48, 1
      %p185 = por %p183, %p184
      %p186 = scmp.ne.s32.totalorder %s178, %s181
      %p187 = scmp.eq.s32.totalorder %s48, 0
      %p188 = por %p186, %p187
      %p189 = scmp.ne.s32.totalorder %s178, %s181
      %p190 = scmp.eq.s32.totalorder %s53, 1
      %p191 = por %p189, %p190
      %p192 = scmp.ne.s32.totalorder %s181, %s182
      %p193 = scmp.eq.s32.totalorder %s53, 0
      %p194 = por %p192, %p193
      %p195 = scmp.ne.s32.totalorder %s181, %s182
      %p196 = scmp.eq.s32.totalorder %s54, 1
      %p197 = por %p195, %p196
      %p199 = scmp.ne.s32.totalorder %s182, %s198
      %p200 = scmp.eq.s32.totalorder %s54, 0
      %p201 = por %p199, %p200
      %s202 = ssub.s32 %s48, %s55
      %p203 = scmp.eq.s32.totalorder %s202, 0
      %s205 = sadd.s32 %s204, 1
      %s206 = scalar_select %p203, %s204, %s205
      %p209 = pneg %p203
      %p210 = scmp.eq.s32.totalorder %s48, 1
      %p211 = por %p209, %p210
      %p212 = scmp.ne.s32.totalorder %s204, %s207
      %p213 = scmp.eq.s32.totalorder %s48, 0
      %p214 = por %p212, %p213
      %p215 = scmp.ne.s32.totalorder %s204, %s207
      %p216 = scmp.eq.s32.totalorder %s53, 1
      %p217 = por %p215, %p216
      %p218 = scmp.ne.s32.totalorder %s207, %s208
      %p219 = scmp.eq.s32.totalorder %s53, 0
      %p220 = por %p218, %p219
      %p221 = scmp.ne.s32.totalorder %s207, %s208
      %p222 = scmp.eq.s32.totalorder %s54, 1
      %p223 = por %p221, %p222
      %p225 = scmp.ne.s32.totalorder %s208, %s224
      %p226 = scmp.eq.s32.totalorder %s54, 0
      %p227 = por %p225, %p226
      %s228 = ssub.s32 %s48, %s55
      %p229 = scmp.eq.s32.totalorder %s228, 0
      %s231 = sadd.s32 %s230, 1
      %s232 = scalar_select %p229, %s230, %s231
      %p235 = pneg %p229
      %p236 = scmp.eq.s32.totalorder %s48, 1
      %p237 = por %p235, %p236
      %p238 = scmp.ne.s32.totalorder %s230, %s233
      %p239 = scmp.eq.s32.totalorder %s48, 0
      %p240 = por %p238, %p239
      %p241 = scmp.ne.s32.totalorder %s230, %s233
      %p242 = scmp.eq.s32.totalorder %s53, 1
      %p243 = por %p241, %p242
      %p244 = scmp.ne.s32.totalorder %s233, %s234
      %p245 = scmp.eq.s32.totalorder %s53, 0
      %p246 = por %p244, %p245
      %p247 = scmp.ne.s32.totalorder %s233, %s234
      %p248 = scmp.eq.s32.totalorder %s54, 1
      %p249 = por %p247, %p248
      %p251 = scmp.ne.s32.totalorder %s234, %s250
      %p252 = scmp.eq.s32.totalorder %s54, 0
      %p253 = por %p251, %p252
      %s255 = sadd.s32 %s254, 1
      %p258 = scmp.eq.s32.totalorder %s48, 1
      %p259 = scmp.ne.s32.totalorder %s254, %s256
      %p260 = scmp.eq.s32.totalorder %s48, 0
      %p261 = por %p259, %p260
      %p262 = scmp.ne.s32.totalorder %s254, %s256
      %p263 = scmp.eq.s32.totalorder %s53, 1
      %p264 = por %p262, %p263
      %p265 = scmp.ne.s32.totalorder %s256, %s257
      %p266 = scmp.eq.s32.totalorder %s53, 0
      %p267 = por %p265, %p266
      %p268 = scmp.ne.s32.totalorder %s256, %s257
      %p269 = scmp.eq.s32.totalorder %s54, 1
      %p270 = por %p268, %p269
      %p272 = scmp.ne.s32.totalorder %s257, %s271
      %p273 = scmp.eq.s32.totalorder %s54, 0
      %p274 = por %p272, %p273
      %s275 = ssub.s32 %s48, %s55
      %p276 = scmp.eq.s32.totalorder %s275, 0
      %s278 = sadd.s32 %s277, 1
      %s279 = scalar_select %p276, %s277, %s278
      %p282 = pneg %p276
      %p283 = scmp.eq.s32.totalorder %s48, 1
      %p284 = por %p282, %p283
      %p285 = scmp.ne.s32.totalorder %s277, %s280
      %p286 = scmp.eq.s32.totalorder %s48, 0
      %p287 = por %p285, %p286
      %p288 = scmp.ne.s32.totalorder %s277, %s280
      %p289 = scmp.eq.s32.totalorder %s53, 1
      %p290 = por %p288, %p289
      %p291 = scmp.ne.s32.totalorder %s280, %s281
      %p292 = scmp.eq.s32.totalorder %s53, 0
      %p293 = por %p291, %p292
      %p294 = scmp.ne.s32.totalorder %s280, %s281
      %p295 = scmp.eq.s32.totalorder %s54, 1
      %p296 = por %p294, %p295
      %p298 = scmp.ne.s32.totalorder %s281, %s297
      %p299 = scmp.eq.s32.totalorder %s54, 0
      %p300 = por %p298, %p299
      %s301 = ssub.s32 %s48, %s55
      %p302 = scmp.eq.s32.totalorder %s301, 0
      %s304 = sadd.s32 %s303, 1
      %s305 = scalar_select %p302, %s303, %s304
      %p308 = pneg %p302
      %p309 = scmp.eq.s32.totalorder %s48, 1
      %p310 = por %p308, %p309
      %p311 = scmp.ne.s32.totalorder %s303, %s306
      %p312 = scmp.eq.s32.totalorder %s48, 0
      %p313 = por %p311, %p312
      %p314 = scmp.ne.s32.totalorder %s303, %s306
      %p315 = scmp.eq.s32.totalorder %s53, 1
      %p316 = por %p314, %p315
      %p317 = scmp.ne.s32.totalorder %s306, %s307
      %p318 = scmp.eq.s32.totalorder %s53, 0
      %p319 = por %p317, %p318
      %p320 = scmp.ne.s32.totalorder %s306, %s307
      %p321 = scmp.eq.s32.totalorder %s54, 1
      %p322 = por %p320, %p321
      %p324 = scmp.ne.s32.totalorder %s307, %s323
      %p325 = scmp.eq.s32.totalorder %s54, 0
      %p326 = por %p324, %p325
      %s327 = ssub.s32 %s48, %s55
      %p328 = scmp.eq.s32.totalorder %s327, 0
      %s330 = sadd.s32 %s329, 1
      %s331 = scalar_select %p328, %s329, %s330
      %p334 = pneg %p328
      %p335 = scmp.eq.s32.totalorder %s48, 1
      %p336 = por %p334, %p335
      %p337 = scmp.ne.s32.totalorder %s329, %s332
      %p338 = scmp.eq.s32.totalorder %s48, 0
      %p339 = por %p337, %p338
      %p340 = scmp.ne.s32.totalorder %s329, %s332
      %p341 = scmp.eq.s32.totalorder %s53, 1
      %p342 = por %p340, %p341
      %p343 = scmp.ne.s32.totalorder %s332, %s333
      %p344 = scmp.eq.s32.totalorder %s53, 0
      %p345 = por %p343, %p344
      %p346 = scmp.ne.s32.totalorder %s332, %s333
      %p347 = scmp.eq.s32.totalorder %s54, 1
      %p348 = por %p346, %p347
      %p350 = scmp.ne.s32.totalorder %s333, %s349
      %p351 = scmp.eq.s32.totalorder %s54, 0
      %p352 = por %p350, %p351
      %s354 = sadd.s32 %s353, 1
      %p357 = scmp.eq.s32.totalorder %s48, 1
      %p358 = scmp.ne.s32.totalorder %s353, %s355
      %p359 = scmp.eq.s32.totalorder %s48, 0
      %p360 = por %p358, %p359
      %p361 = scmp.ne.s32.totalorder %s353, %s355
      %p362 = scmp.eq.s32.totalorder %s53, 1
      %p363 = por %p361, %p362
      %p364 = scmp.ne.s32.totalorder %s355, %s356
      %p365 = scmp.eq.s32.totalorder %s53, 0
      %p366 = por %p364, %p365
      %p367 = scmp.ne.s32.totalorder %s355, %s356
      %p368 = scmp.eq.s32.totalorder %s54, 1
      %p369 = por %p367, %p368
      %p371 = scmp.ne.s32.totalorder %s356, %s370
      %p372 = scmp.eq.s32.totalorder %s54, 0
      %p373 = por %p371, %p372
      %s375 = sadd.s32 %s374, 1
      %p378 = scmp.eq.s32.totalorder %s48, 1
      %p379 = scmp.ne.s32.totalorder %s374, %s376
      %p380 = scmp.eq.s32.totalorder %s48, 0
      %p381 = por %p379, %p380
      %p382 = scmp.ne.s32.totalorder %s374, %s376
      %p383 = scmp.eq.s32.totalorder %s53, 1
      %p384 = por %p382, %p383
      %p385 = scmp.ne.s32.totalorder %s376, %s377
      %p386 = scmp.eq.s32.totalorder %s53, 0
      %p387 = por %p385, %p386
      %p388 = scmp.ne.s32.totalorder %s376, %s377
      %p389 = scmp.eq.s32.totalorder %s54, 1
      %p390 = por %p388, %p389
      %p392 = scmp.ne.s32.totalorder %s377, %s391
      %p393 = scmp.eq.s32.totalorder %s54, 0
      %p394 = por %p392, %p393
      %s395 = ssub.s32 %s48, %s55
      %p396 = scmp.eq.s32.totalorder %s395, 0
      %s398 = sadd.s32 %s397, 1
      %s399 = scalar_select %p396, %s397, %s398
      %p402 = pneg %p396
      %p403 = scmp.eq.s32.totalorder %s48, 1
      %p404 = por %p402, %p403
      %p405 = scmp.ne.s32.totalorder %s397, %s400
      %p406 = scmp.eq.s32.totalorder %s48, 0
      %p407 = por %p405, %p406
      %p408 = scmp.ne.s32.totalorder %s397, %s400
      %p409 = scmp.eq.s32.totalorder %s53, 1
      %p410 = por %p408, %p409
      %p411 = scmp.ne.s32.totalorder %s400, %s401
      %p412 = scmp.eq.s32.totalorder %s53, 0
      %p413 = por %p411, %p412
      %p414 = scmp.ne.s32.totalorder %s400, %s401
      %p415 = scmp.eq.s32.totalorder %s54, 1
      %p416 = por %p414, %p415
      %p418 = scmp.ne.s32.totalorder %s401, %s417
      %p419 = scmp.eq.s32.totalorder %s54, 0
      %p420 = por %p418, %p419
      %s421 = ssub.s32 %s48, %s55
      %p422 = scmp.eq.s32.totalorder %s421, 0
      %s424 = sadd.s32 %s423, 1
      %s425 = scalar_select %p422, %s423, %s424
      %p428 = pneg %p422
      %p429 = scmp.eq.s32.totalorder %s48, 1
      %p430 = por %p428, %p429
      %p431 = scmp.ne.s32.totalorder %s423, %s426
      %p432 = scmp.eq.s32.totalorder %s48, 0
      %p433 = por %p431, %p432
      %p434 = scmp.ne.s32.totalorder %s423, %s426
      %p435 = scmp.eq.s32.totalorder %s53, 1
      %p436 = por %p434, %p435
      %p437 = scmp.ne.s32.totalorder %s426, %s427
      %p438 = scmp.eq.s32.totalorder %s53, 0
      %p439 = por %p437, %p438
      %p440 = scmp.ne.s32.totalorder %s426, %s427
      %p441 = scmp.eq.s32.totalorder %s54, 1
      %p442 = por %p440, %p441
      %p444 = scmp.ne.s32.totalorder %s427, %s443
      %p445 = scmp.eq.s32.totalorder %s54, 0
      %p446 = por %p444, %p445
      %s447 = ssub.s32 %s48, %s55
      %p448 = scmp.eq.s32.totalorder %s447, 0
      %s450 = sadd.s32 %s449, 1
      %s451 = scalar_select %p448, %s449, %s450
      %p454 = pneg %p448
      %p455 = scmp.eq.s32.totalorder %s48, 1
      %p456 = por %p454, %p455
      %p457 = scmp.ne.s32.totalorder %s449, %s452
      %p458 = scmp.eq.s32.totalorder %s48, 0
      %p459 = por %p457, %p458
      %p460 = scmp.ne.s32.totalorder %s449, %s452
      %p461 = scmp.eq.s32.totalorder %s53, 1
      %p462 = por %p460, %p461
      %p463 = scmp.ne.s32.totalorder %s452, %s453
      %p464 = scmp.eq.s32.totalorder %s53, 0
      %p465 = por %p463, %p464
      %p466 = scmp.ne.s32.totalorder %s452, %s453
      %p467 = scmp.eq.s32.totalorder %s54, 1
      %p468 = por %p466, %p467
      %p470 = scmp.ne.s32.totalorder %s453, %s469
      %p471 = scmp.eq.s32.totalorder %s54, 0
      %p472 = por %p470, %p471
      %s474 = sadd.s32 %s473, 1
      %p477 = scmp.eq.s32.totalorder %s48, 1
      %p478 = scmp.ne.s32.totalorder %s473, %s475
      %p479 = scmp.eq.s32.totalorder %s48, 0
      %p480 = por %p478, %p479
      %p481 = scmp.ne.s32.totalorder %s473, %s475
      %p482 = scmp.eq.s32.totalorder %s53, 1
      %p483 = por %p481, %p482
      %p484 = scmp.ne.s32.totalorder %s475, %s476
      %p485 = scmp.eq.s32.totalorder %s53, 0
      %p486 = por %p484, %p485
      %p487 = scmp.ne.s32.totalorder %s475, %s476
      %p488 = scmp.eq.s32.totalorder %s54, 1
      %p489 = por %p487, %p488
      %p491 = scmp.ne.s32.totalorder %s476, %s490
      %p492 = scmp.eq.s32.totalorder %s54, 0
      %p493 = por %p491, %p492
      %s494 = ssub.s32 %s48, %s55
      %p495 = scmp.eq.s32.totalorder %s494, 0
      %s497 = sadd.s32 %s496, 1
      %s498 = scalar_select %p495, %s496, %s497
      %p501 = pneg %p495
      %p502 = scmp.eq.s32.totalorder %s48, 1
      %p503 = por %p501, %p502
      %p504 = scmp.ne.s32.totalorder %s496, %s499
      %p505 = scmp.eq.s32.totalorder %s48, 0
      %p506 = por %p504, %p505
      %p507 = scmp.ne.s32.totalorder %s496, %s499
      %p508 = scmp.eq.s32.totalorder %s53, 1
      %p509 = por %p507, %p508
      %p510 = scmp.ne.s32.totalorder %s499, %s500
      %p511 = scmp.eq.s32.totalorder %s53, 0
      %p512 = por %p510, %p511
      %p513 = scmp.ne.s32.totalorder %s499, %s500
      %p514 = scmp.eq.s32.totalorder %s54, 1
      %p515 = por %p513, %p514
      %p517 = scmp.ne.s32.totalorder %s500, %s516
      %p518 = scmp.eq.s32.totalorder %s54, 0
      %p519 = por %p517, %p518
      %s520 = ssub.s32 %s48, %s55
      %p521 = scmp.eq.s32.totalorder %s520, 0
      %s523 = sadd.s32 %s522, 1
      %s524 = scalar_select %p521, %s522, %s523
      %p527 = pneg %p521
      %p528 = scmp.eq.s32.totalorder %s48, 1
      %p529 = por %p527, %p528
      %p530 = scmp.ne.s32.totalorder %s522, %s525
      %p531 = scmp.eq.s32.totalorder %s48, 0
      %p532 = por %p530, %p531
      %p533 = scmp.ne.s32.totalorder %s522, %s525
      %p534 = scmp.eq.s32.totalorder %s53, 1
      %p535 = por %p533, %p534
      %p536 = scmp.ne.s32.totalorder %s525, %s526
      %p537 = scmp.eq.s32.totalorder %s53, 0
      %p538 = por %p536, %p537
      %p539 = scmp.ne.s32.totalorder %s525, %s526
      %p540 = scmp.eq.s32.totalorder %s54, 1
      %p541 = por %p539, %p540
      %p543 = scmp.ne.s32.totalorder %s526, %s542
      %p544 = scmp.eq.s32.totalorder %s54, 0
      %p545 = por %p543, %p544
      %s546 = ssub.s32 %s48, %s55
      %p547 = scmp.eq.s32.totalorder %s546, 0
      %s549 = sadd.s32 %s548, 1
      %s550 = scalar_select %p547, %s548, %s549
      %p553 = pneg %p547
      %p554 = scmp.eq.s32.totalorder %s48, 1
      %p555 = por %p553, %p554
      %p556 = scmp.ne.s32.totalorder %s548, %s551
      %p557 = scmp.eq.s32.totalorder %s48, 0
      %p558 = por %p556, %p557
      %p559 = scmp.ne.s32.totalorder %s548, %s551
      %p560 = scmp.eq.s32.totalorder %s53, 1
      %p561 = por %p559, %p560
      %p562 = scmp.ne.s32.totalorder %s551, %s552
      %p563 = scmp.eq.s32.totalorder %s53, 0
      %p564 = por %p562, %p563
      %p565 = scmp.ne.s32.totalorder %s551, %s552
      %p566 = scmp.eq.s32.totalorder %s54, 1
      %p567 = por %p565, %p566
      %p569 = scmp.ne.s32.totalorder %s552, %s568
      %p570 = scmp.eq.s32.totalorder %s54, 0
      %p571 = por %p569, %p570
      %s573 = sadd.s32 %s572, 1
      %p576 = scmp.eq.s32.totalorder %s48, 1
      %p577 = scmp.ne.s32.totalorder %s572, %s574
      %p578 = scmp.eq.s32.totalorder %s48, 0
      %p579 = por %p577, %p578
      %p580 = scmp.ne.s32.totalorder %s572, %s574
      %p581 = scmp.eq.s32.totalorder %s53, 1
      %p582 = por %p580, %p581
      %p583 = scmp.ne.s32.totalorder %s574, %s575
      %p584 = scmp.eq.s32.totalorder %s53, 0
      %p585 = por %p583, %p584
      %p586 = scmp.ne.s32.totalorder %s574, %s575
      %p587 = scmp.eq.s32.totalorder %s54, 1
      %p588 = por %p586, %p587
      %p590 = scmp.ne.s32.totalorder %s575, %s589
      %p591 = scmp.eq.s32.totalorder %s54, 0
      %p592 = por %p590, %p591
      %p593 = scmp.le.s32.totalorder 1, %s48
      %p594 = scmp.lt.s32.totalorder %s48, 3
      %p595 = pnand %p593, %p594
      %p596 = pneg %p595
      // Predicated region
      $region9: #{sdr_forward.3} parent=5 // pred_check
        _
      $region10: #{sdr_forward.3} parent=5 // pred_check_branch
        %598 = sbr.rel (%p595) target = $region12
      $region11: #{sdr_forward.3} parent=5 // pred_region
        %s599 = ssub.s32 %s48, 1
        // Predicated region
        $region13: #{sdr_forward.3} parent=11 // pred_check
          %p600 = pneg %p69
        $region14: #{sdr_forward.3} parent=11 // pred_check_branch
          %602 = sbr.rel (%p600) target = $region16
        $region15: #{sdr_forward.3} parent=11 // pred_region
          _
        $region16: #{sdr_forward.3} parent=11 // pred_fallthru
          _
        // Predicated region
        $region17: #{sdr_forward.3} parent=11 // pred_check
          %p603 = pneg %p168
        $region18: #{sdr_forward.3} parent=11 // pred_check_branch
          %605 = sbr.rel (%p603) target = $region20
        $region19: #{sdr_forward.3} parent=11 // pred_region
          _
        $region20: #{sdr_forward.3} parent=11 // pred_fallthru
          _
        // Predicated region
        $region21: #{sdr_forward.3} parent=11 // pred_check
          %p606 = pneg %p267
        $region22: #{sdr_forward.3} parent=11 // pred_check_branch
          %608 = sbr.rel (%p606) target = $region24
        $region23: #{sdr_forward.3} parent=11 // pred_region
          %610 = vsyncadd [#allocation11], 0
          %s612 = sshll.u32 %s8, 4
          %s613 = int_to_ptr.hbm [resolvable:$true] %s612
          %s614 = sshll.u32 [#allocation10], 4
          %s615 = int_to_ptr.vmem [resolvable:$true] %s614
          %617 = dma.hbm_to_vmem [thread:$0]  %s613, 16, %s615, [#allocation11]
        $region24: #{sdr_forward.3} parent=11 // pred_fallthru
          _
        // Predicated region
        $region25: #{sdr_forward.3} parent=11 // pred_check
          %p618 = pneg %p366
        $region26: #{sdr_forward.3} parent=11 // pred_check_branch
          %620 = sbr.rel (%p618) target = $region28
        $region27: #{sdr_forward.3} parent=11 // pred_region
          _
        $region28: #{sdr_forward.3} parent=11 // pred_fallthru
          _
      $region12: #{sdr_forward.3} parent=5 // pred_fallthru
        _
      %p621 = scmp.lt.s32.totalorder %s48, 2
      // Predicated region
      $region29: #{sdr_forward.3} parent=5 // pred_check
        %p622 = pneg %p621
      $region30: #{sdr_forward.3} parent=5 // pred_check_branch
        %624 = sbr.rel (%p622) target = $region32
      $region31: #{sdr_forward.3} parent=5 // pred_region
        // Predicated region
        $region33: #{sdr_forward.3} parent=31 // pred_check
          %p625 = pneg %p89
        $region34: #{sdr_forward.3} parent=31 // pred_check_branch
          %627 = sbr.rel (%p625) target = $region36
        $region35: #{sdr_forward.3} parent=31 // pred_region
          %s628 = sand.u32 %s79, 1
          %s629 = sand.u32 %s79, 1
          %s630 = smul.addr %s629, 128
          %s631 = scalar_lea.vmem [#allocation3], %s630
          %s632 = smul.addr %s48, 8
          %s633 = scalar_lea.vmem %s1, %s632
          // Predicated region
          $region37: #{sdr_forward.3} parent=35 // pred_check
            _
          $region38: #{sdr_forward.3} parent=35 // pred_check_branch
            %635 = sbr.rel (0) target = $region40
          $region39: #{sdr_forward.3} parent=35 // pred_region
            // Predicated region
            $region41: #{sdr_forward.3} parent=39 // pred_check
              _
            $region42: #{sdr_forward.3} parent=39 // pred_check_branch
              %637 = sbr.rel (0) target = $region44
            $region43: #{sdr_forward.3} parent=39 // pred_region
              // Predicated region
              $region56: #{sdr_forward.3} parent=43 // pred_check
                _
              $region57: #{sdr_forward.3} parent=43 // pred_check_branch
                %683 = sbr.rel (0) target = $region59
              $region58: #{sdr_forward.3} parent=43 // pred_region
                loop: start=0, step=1, limit=1
                $region60: #{sdr_forward.3} parent=58 // loop_pre_header
                  _
                $region61: #{sdr_forward.3} parent=58 // loop_header
                  %s685 = sphi 0, %s689
                  %p686 = scmp.ge.s32.totalorder %s685, 1
                  %s690 = sphi %s633, %s633
                  %s691 = sphi %s631, %s631
                $region62: #{sdr_forward.3} parent=58 // loop_header_branch
                  %688 = sbr.rel (%p686) target = $region66
                $region63: #{sdr_forward.3} parent=58 // loop_body
                  %v692 = vld [vmem:[%s690] sm:$0xff]
                  %693 = vst [vmem:[%s691] sm:$0xff] %v692
                  %v694 = vld [vmem:[%s690 + $0x10] sm:$0xff]
                  %695 = vst [vmem:[%s691 + $0x8] sm:$0xff] %v694
                  %v696 = vld [vmem:[%s690 + $0x20] sm:$0xff]
                  %697 = vst [vmem:[%s691 + $0x10] sm:$0xff] %v696
                  %v698 = vld [vmem:[%s690 + $0x30] sm:$0xff]
                  %699 = vst [vmem:[%s691 + $0x18] sm:$0xff] %v698
                  %v700 = vld [vmem:[%s690 + $0x40] sm:$0xff]
                  %701 = vst [vmem:[%s691 + $0x20] sm:$0xff] %v700
                  %v702 = vld [vmem:[%s690 + $0x50] sm:$0xff]
                  %703 = vst [vmem:[%s691 + $0x28] sm:$0xff] %v702
                  %v704 = vld [vmem:[%s690 + $0x60] sm:$0xff]
                  %705 = vst [vmem:[%s691 + $0x30] sm:$0xff] %v704
                  %v706 = vld [vmem:[%s690 + $0x70] sm:$0xff]
                  %707 = vst [vmem:[%s691 + $0x38] sm:$0xff] %v706
                  %v708 = vld [vmem:[%s690 + $0x80] sm:$0xff]
                  %709 = vst [vmem:[%s691 + $0x40] sm:$0xff] %v708
                  %v710 = vld [vmem:[%s690 + $0x90] sm:$0xff]
                  %711 = vst [vmem:[%s691 + $0x48] sm:$0xff] %v710
                  %v712 = vld [vmem:[%s690 + $0xa0] sm:$0xff]
                  %713 = vst [vmem:[%s691 + $0x50] sm:$0xff] %v712
                  %v714 = vld [vmem:[%s690 + $0xb0] sm:$0xff]
                  %715 = vst [vmem:[%s691 + $0x58] sm:$0xff] %v714
                  %v716 = vld [vmem:[%s690 + $0xc0] sm:$0xff]
                  %717 = vst [vmem:[%s691 + $0x60] sm:$0xff] %v716
                  %v718 = vld [vmem:[%s690 + $0xd0] sm:$0xff]
                  %719 = vst [vmem:[%s691 + $0x68] sm:$0xff] %v718
                  %v720 = vld [vmem:[%s690 + $0xe0] sm:$0xff]
                  %721 = vst [vmem:[%s691 + $0x70] sm:$0xff] %v720
                  %v722 = vld [vmem:[%s690 + $0xf0] sm:$0xff]
                  %723 = vst [vmem:[%s691 + $0x78] sm:$0xff] %v722
                $region64: #{sdr_forward.3} parent=58 // loop_footer
                  %s689 = sadd.s32 1, %s685
                $region65: #{sdr_forward.3} parent=58 // loop_footer_branch
                  %684 = sbr.rel target = $region61
                $region66: #{sdr_forward.3} parent=58 // loop_exit
                  _
              $region59: #{sdr_forward.3} parent=43 // pred_fallthru
                _
              // Predicated region
              $region67: #{sdr_forward.3} parent=43 // pred_check
                _
              $region68: #{sdr_forward.3} parent=43 // pred_check_branch
                %725 = sbr.rel target = $region70
              $region69: #{sdr_forward.3} parent=43 // pred_region
                _
              $region70: #{sdr_forward.3} parent=43 // pred_fallthru
                _
            $region44: #{sdr_forward.3} parent=39 // pred_fallthru
              _
            // Predicated region
            $region45: #{sdr_forward.3} parent=39 // pred_check
              _
            $region46: #{sdr_forward.3} parent=39 // pred_check_branch
              %639 = sbr.rel target = $region48
            $region47: #{sdr_forward.3} parent=39 // pred_region
              %s641 = ssub.s32 256, 1
              loop: start=0, step=1, limit=1
              $region49: #{sdr_forward.3} parent=47 // loop_pre_header
                _
              $region50: #{sdr_forward.3} parent=47 // loop_header
                %s643 = sphi 0, %s647
                %p644 = scmp.ge.s32.totalorder %s643, 1
                %s648 = sphi %s633, %s633
                %s649 = sphi %s631, %s631
              $region51: #{sdr_forward.3} parent=47 // loop_header_branch
                %646 = sbr.rel (%p644) target = $region55
              $region52: #{sdr_forward.3} parent=47 // loop_body
                %v650 = vld [vmem:[%s648] sm:%s641]
                %651 = vst [vmem:[%s649] sm:%s641] %v650
                %v652 = vld [vmem:[%s648 + $0x10] sm:%s641]
                %653 = vst [vmem:[%s649 + $0x8] sm:%s641] %v652
                %v654 = vld [vmem:[%s648 + $0x20] sm:%s641]
                %655 = vst [vmem:[%s649 + $0x10] sm:%s641] %v654
                %v656 = vld [vmem:[%s648 + $0x30] sm:%s641]
                %657 = vst [vmem:[%s649 + $0x18] sm:%s641] %v656
                %v658 = vld [vmem:[%s648 + $0x40] sm:%s641]
                %659 = vst [vmem:[%s649 + $0x20] sm:%s641] %v658
                %v660 = vld [vmem:[%s648 + $0x50] sm:%s641]
                %661 = vst [vmem:[%s649 + $0x28] sm:%s641] %v660
                %v662 = vld [vmem:[%s648 + $0x60] sm:%s641]
                %663 = vst [vmem:[%s649 + $0x30] sm:%s641] %v662
                %v664 = vld [vmem:[%s648 + $0x70] sm:%s641]
                %665 = vst [vmem:[%s649 + $0x38] sm:%s641] %v664
                %v666 = vld [vmem:[%s648 + $0x80] sm:%s641]
                %667 = vst [vmem:[%s649 + $0x40] sm:%s641] %v666
                %v668 = vld [vmem:[%s648 + $0x90] sm:%s641]
                %669 = vst [vmem:[%s649 + $0x48] sm:%s641] %v668
                %v670 = vld [vmem:[%s648 + $0xa0] sm:%s641]
                %671 = vst [vmem:[%s649 + $0x50] sm:%s641] %v670
                %v672 = vld [vmem:[%s648 + $0xb0] sm:%s641]
                %673 = vst [vmem:[%s649 + $0x58] sm:%s641] %v672
                %v674 = vld [vmem:[%s648 + $0xc0] sm:%s641]
                %675 = vst [vmem:[%s649 + $0x60] sm:%s641] %v674
                %v676 = vld [vmem:[%s648 + $0xd0] sm:%s641]
                %677 = vst [vmem:[%s649 + $0x68] sm:%s641] %v676
                %v678 = vld [vmem:[%s648 + $0xe0] sm:%s641]
                %679 = vst [vmem:[%s649 + $0x70] sm:%s641] %v678
                %v680 = vld [vmem:[%s648 + $0xf0] sm:%s641]
                %681 = vst [vmem:[%s649 + $0x78] sm:%s641] %v680
              $region53: #{sdr_forward.3} parent=47 // loop_footer
                %s647 = sadd.s32 1, %s643
              $region54: #{sdr_forward.3} parent=47 // loop_footer_branch
                %642 = sbr.rel target = $region50
              $region55: #{sdr_forward.3} parent=47 // loop_exit
                _
            $region48: #{sdr_forward.3} parent=39 // pred_fallthru
              _
          $region40: #{sdr_forward.3} parent=35 // pred_fallthru
            _
          %726 = vnop
        $region36: #{sdr_forward.3} parent=31 // pred_fallthru
          _
        // Predicated region
        $region71: #{sdr_forward.3} parent=31 // pred_check
          %p727 = pneg %p115
        $region72: #{sdr_forward.3} parent=31 // pred_check_branch
          %729 = sbr.rel (%p727) target = $region74
        $region73: #{sdr_forward.3} parent=31 // pred_region
          %p730 = scmp.lt.s32.totalorder %s48, 1
          %s731 = scalar_select %p730, %s48, 1
          %s732 = scalar_lea.vmem %s2, %s731
        $region74: #{sdr_forward.3} parent=31 // pred_fallthru
          _
        // Predicated region
        $region75: #{sdr_forward.3} parent=31 // pred_check
          %p733 = pneg %p141
        $region76: #{sdr_forward.3} parent=31 // pred_check_branch
          %735 = sbr.rel (%p733) target = $region78
        $region77: #{sdr_forward.3} parent=31 // pred_region
          %s736 = smul.u32 16, %s48
          %p737 = scmp.lt.s32.totalorder %s736, 31
          %s738 = scalar_select %p737, %s736, 31
          %s739 = smul.addr %s738, 8
          %s740 = scalar_lea.vmem %s3, %s739
          %s741 = smul.u32 16, %s48
        $region78: #{sdr_forward.3} parent=31 // pred_fallthru
          _
        // Predicated region
        $region79: #{sdr_forward.3} parent=31 // pred_check
          %p742 = pneg %p188
        $region80: #{sdr_forward.3} parent=31 // pred_check_branch
          %744 = sbr.rel (%p742) target = $region82
        $region81: #{sdr_forward.3} parent=31 // pred_region
          %s745 = sand.u32 %s178, 1
          %s746 = scalar_lea.sflag [#allocation5], %s745
          %s747 = sand.u32 %s178, 1
          %s748 = smul.addr %s747, 128
          %s749 = scalar_lea.vmem [#allocation4], %s748
          %751 = vsyncadd %s746, 0
          %s752 = smul.addr %s48, 8
          %s753 = scalar_lea.hbm %s5, %s752
          %s754 = sshll.u32 %s753, 4
          %s755 = int_to_ptr.hbm [resolvable:$true] %s754
          %s756 = sshll.u32 %s749, 4
          %s757 = int_to_ptr.vmem [resolvable:$true] %s756
          %762 = dma.hbm_to_vmem [thread:$0]  %s755, 2048, %s757, %s746, 256, 128, 8
        $region82: #{sdr_forward.3} parent=31 // pred_fallthru
          _
        // Predicated region
        $region83: #{sdr_forward.3} parent=31 // pred_check
          %p763 = pneg %p214
        $region84: #{sdr_forward.3} parent=31 // pred_check_branch
          %765 = sbr.rel (%p763) target = $region86
        $region85: #{sdr_forward.3} parent=31 // pred_region
          %s766 = sand.u32 %s48, 1
          %s767 = scalar_lea.sflag [#allocation8], %s766
          %s768 = sand.u32 %s204, 1
          %s769 = scalar_lea.vmem [#allocation7], %s768
          %771 = vsyncadd %s767, 0
          %s772 = scalar_lea.hbm %s6, %s48
          %s774 = sshll.u32 %s772, 4
          %s775 = int_to_ptr.hbm [resolvable:$true] %s774
          %s776 = sshll.u32 %s769, 4
          %s777 = int_to_ptr.vmem [resolvable:$true] %s776
          %779 = dma.hbm_to_vmem [thread:$0]  %s775, 16, %s777, %s767
        $region86: #{sdr_forward.3} parent=31 // pred_fallthru
          _
        // Predicated region
        $region87: #{sdr_forward.3} parent=31 // pred_check
          %p780 = pneg %p240
        $region88: #{sdr_forward.3} parent=31 // pred_check_branch
          %782 = sbr.rel (%p780) target = $region90
        $region89: #{sdr_forward.3} parent=31 // pred_region
          %s783 = sand.u32 %s48, 1
          %s784 = scalar_lea.sflag [#allocation8], %s783
          %s785 = sand.u32 %s230, 1
          %s786 = smul.addr %s785, 128
          %s787 = scalar_lea.vmem [#allocation9], %s786
          %s788 = smul.u32 16, %s48
          %790 = vsyncadd %s784, 0
          %s791 = smul.addr %s788, 8
          %s792 = scalar_lea.hbm %s7, %s791
          %s793 = sshll.u32 %s792, 4
          %s794 = int_to_ptr.hbm [resolvable:$true] %s793
          %s795 = sshll.u32 %s787, 4
          %s796 = int_to_ptr.vmem [resolvable:$true] %s795
          %801 = dma.hbm_to_vmem [thread:$0]  %s794, 2048, %s796, %s784, 128, 128, 8
        $region90: #{sdr_forward.3} parent=31 // pred_fallthru
          _
        // Predicated region
        $region91: #{sdr_forward.3} parent=31 // pred_check
          %p802 = pneg %p287
        $region92: #{sdr_forward.3} parent=31 // pred_check_branch
          %804 = sbr.rel (%p802) target = $region94
        $region93: #{sdr_forward.3} parent=31 // pred_region
          %s805 = sand.u32 %s277, 1
          %s806 = sand.u32 %s277, 1
          %s807 = smul.addr %s806, 128
          %s808 = scalar_lea.vmem [#allocation12], %s807
          %s809 = smul.addr %s48, 8
          %s810 = scalar_lea.vmem %s9, %s809
          // Predicated region
          $region95: #{sdr_forward.3} parent=93 // pred_check
            _
          $region96: #{sdr_forward.3} parent=93 // pred_check_branch
            %812 = sbr.rel (0) target = $region98
          $region97: #{sdr_forward.3} parent=93 // pred_region
            // Predicated region
            $region99: #{sdr_forward.3} parent=97 // pred_check
              _
            $region100: #{sdr_forward.3} parent=97 // pred_check_branch
              %814 = sbr.rel (0) target = $region102
            $region101: #{sdr_forward.3} parent=97 // pred_region
              // Predicated region
              $region114: #{sdr_forward.3} parent=101 // pred_check
                _
              $region115: #{sdr_forward.3} parent=101 // pred_check_branch
                %860 = sbr.rel (0) target = $region117
              $region116: #{sdr_forward.3} parent=101 // pred_region
                loop: start=0, step=1, limit=1
                $region118: #{sdr_forward.3} parent=116 // loop_pre_header
                  _
                $region119: #{sdr_forward.3} parent=116 // loop_header
                  %s862 = sphi 0, %s866
                  %p863 = scmp.ge.s32.totalorder %s862, 1
                  %s867 = sphi %s810, %s810
                  %s868 = sphi %s808, %s808
                $region120: #{sdr_forward.3} parent=116 // loop_header_branch
                  %865 = sbr.rel (%p863) target = $region124
                $region121: #{sdr_forward.3} parent=116 // loop_body
                  %v869 = vld [vmem:[%s867] sm:$0xff]
                  %870 = vst [vmem:[%s868] sm:$0xff] %v869
                  %v871 = vld [vmem:[%s867 + $0x10] sm:$0xff]
                  %872 = vst [vmem:[%s868 + $0x8] sm:$0xff] %v871
                  %v873 = vld [vmem:[%s867 + $0x20] sm:$0xff]
                  %874 = vst [vmem:[%s868 + $0x10] sm:$0xff] %v873
                  %v875 = vld [vmem:[%s867 + $0x30] sm:$0xff]
                  %876 = vst [vmem:[%s868 + $0x18] sm:$0xff] %v875
                  %v877 = vld [vmem:[%s867 + $0x40] sm:$0xff]
                  %878 = vst [vmem:[%s868 + $0x20] sm:$0xff] %v877
                  %v879 = vld [vmem:[%s867 + $0x50] sm:$0xff]
                  %880 = vst [vmem:[%s868 + $0x28] sm:$0xff] %v879
                  %v881 = vld [vmem:[%s867 + $0x60] sm:$0xff]
                  %882 = vst [vmem:[%s868 + $0x30] sm:$0xff] %v881
                  %v883 = vld [vmem:[%s867 + $0x70] sm:$0xff]
                  %884 = vst [vmem:[%s868 + $0x38] sm:$0xff] %v883
                  %v885 = vld [vmem:[%s867 + $0x80] sm:$0xff]
                  %886 = vst [vmem:[%s868 + $0x40] sm:$0xff] %v885
                  %v887 = vld [vmem:[%s867 + $0x90] sm:$0xff]
                  %888 = vst [vmem:[%s868 + $0x48] sm:$0xff] %v887
                  %v889 = vld [vmem:[%s867 + $0xa0] sm:$0xff]
                  %890 = vst [vmem:[%s868 + $0x50] sm:$0xff] %v889
                  %v891 = vld [vmem:[%s867 + $0xb0] sm:$0xff]
                  %892 = vst [vmem:[%s868 + $0x58] sm:$0xff] %v891
                  %v893 = vld [vmem:[%s867 + $0xc0] sm:$0xff]
                  %894 = vst [vmem:[%s868 + $0x60] sm:$0xff] %v893
                  %v895 = vld [vmem:[%s867 + $0xd0] sm:$0xff]
                  %896 = vst [vmem:[%s868 + $0x68] sm:$0xff] %v895
                  %v897 = vld [vmem:[%s867 + $0xe0] sm:$0xff]
                  %898 = vst [vmem:[%s868 + $0x70] sm:$0xff] %v897
                  %v899 = vld [vmem:[%s867 + $0xf0] sm:$0xff]
                  %900 = vst [vmem:[%s868 + $0x78] sm:$0xff] %v899
                $region122: #{sdr_forward.3} parent=116 // loop_footer
                  %s866 = sadd.s32 1, %s862
                $region123: #{sdr_forward.3} parent=116 // loop_footer_branch
                  %861 = sbr.rel target = $region119
                $region124: #{sdr_forward.3} parent=116 // loop_exit
                  _
              $region117: #{sdr_forward.3} parent=101 // pred_fallthru
                _
              // Predicated region
              $region125: #{sdr_forward.3} parent=101 // pred_check
                _
              $region126: #{sdr_forward.3} parent=101 // pred_check_branch
                %902 = sbr.rel target = $region128
              $region127: #{sdr_forward.3} parent=101 // pred_region
                _
              $region128: #{sdr_forward.3} parent=101 // pred_fallthru
                _
            $region102: #{sdr_forward.3} parent=97 // pred_fallthru
              _
            // Predicated region
            $region103: #{sdr_forward.3} parent=97 // pred_check
              _
            $region104: #{sdr_forward.3} parent=97 // pred_check_branch
              %816 = sbr.rel target = $region106
            $region105: #{sdr_forward.3} parent=97 // pred_region
              %s818 = ssub.s32 256, 1
              loop: start=0, step=1, limit=1
              $region107: #{sdr_forward.3} parent=105 // loop_pre_header
                _
              $region108: #{sdr_forward.3} parent=105 // loop_header
                %s820 = sphi 0, %s824
                %p821 = scmp.ge.s32.totalorder %s820, 1
                %s825 = sphi %s810, %s810
                %s826 = sphi %s808, %s808
              $region109: #{sdr_forward.3} parent=105 // loop_header_branch
                %823 = sbr.rel (%p821) target = $region113
              $region110: #{sdr_forward.3} parent=105 // loop_body
                %v827 = vld [vmem:[%s825] sm:%s818]
                %828 = vst [vmem:[%s826] sm:%s818] %v827
                %v829 = vld [vmem:[%s825 + $0x10] sm:%s818]
                %830 = vst [vmem:[%s826 + $0x8] sm:%s818] %v829
                %v831 = vld [vmem:[%s825 + $0x20] sm:%s818]
                %832 = vst [vmem:[%s826 + $0x10] sm:%s818] %v831
                %v833 = vld [vmem:[%s825 + $0x30] sm:%s818]
                %834 = vst [vmem:[%s826 + $0x18] sm:%s818] %v833
                %v835 = vld [vmem:[%s825 + $0x40] sm:%s818]
                %836 = vst [vmem:[%s826 + $0x20] sm:%s818] %v835
                %v837 = vld [vmem:[%s825 + $0x50] sm:%s818]
                %838 = vst [vmem:[%s826 + $0x28] sm:%s818] %v837
                %v839 = vld [vmem:[%s825 + $0x60] sm:%s818]
                %840 = vst [vmem:[%s826 + $0x30] sm:%s818] %v839
                %v841 = vld [vmem:[%s825 + $0x70] sm:%s818]
                %842 = vst [vmem:[%s826 + $0x38] sm:%s818] %v841
                %v843 = vld [vmem:[%s825 + $0x80] sm:%s818]
                %844 = vst [vmem:[%s826 + $0x40] sm:%s818] %v843
                %v845 = vld [vmem:[%s825 + $0x90] sm:%s818]
                %846 = vst [vmem:[%s826 + $0x48] sm:%s818] %v845
                %v847 = vld [vmem:[%s825 + $0xa0] sm:%s818]
                %848 = vst [vmem:[%s826 + $0x50] sm:%s818] %v847
                %v849 = vld [vmem:[%s825 + $0xb0] sm:%s818]
                %850 = vst [vmem:[%s826 + $0x58] sm:%s818] %v849
                %v851 = vld [vmem:[%s825 + $0xc0] sm:%s818]
                %852 = vst [vmem:[%s826 + $0x60] sm:%s818] %v851
                %v853 = vld [vmem:[%s825 + $0xd0] sm:%s818]
                %854 = vst [vmem:[%s826 + $0x68] sm:%s818] %v853
                %v855 = vld [vmem:[%s825 + $0xe0] sm:%s818]
                %856 = vst [vmem:[%s826 + $0x70] sm:%s818] %v855
                %v857 = vld [vmem:[%s825 + $0xf0] sm:%s818]
                %858 = vst [vmem:[%s826 + $0x78] sm:%s818] %v857
              $region111: #{sdr_forward.3} parent=105 // loop_footer
                %s824 = sadd.s32 1, %s820
              $region112: #{sdr_forward.3} parent=105 // loop_footer_branch
                %819 = sbr.rel target = $region108
              $region113: #{sdr_forward.3} parent=105 // loop_exit
                _
            $region106: #{sdr_forward.3} parent=97 // pred_fallthru
              _
          $region98: #{sdr_forward.3} parent=93 // pred_fallthru
            _
          %903 = vnop
        $region94: #{sdr_forward.3} parent=31 // pred_fallthru
          _
        // Predicated region
        $region129: #{sdr_forward.3} parent=31 // pred_check
          %p904 = pneg %p313
        $region130: #{sdr_forward.3} parent=31 // pred_check_branch
          %906 = sbr.rel (%p904) target = $region132
        $region131: #{sdr_forward.3} parent=31 // pred_region
          %p907 = scmp.lt.s32.totalorder %s48, 1
          %s908 = scalar_select %p907, %s48, 1
          %s909 = scalar_lea.vmem %s10, %s908
        $region132: #{sdr_forward.3} parent=31 // pred_fallthru
          _
        // Predicated region
        $region133: #{sdr_forward.3} parent=31 // pred_check
          %p910 = pneg %p339
        $region134: #{sdr_forward.3} parent=31 // pred_check_branch
          %912 = sbr.rel (%p910) target = $region136
        $region135: #{sdr_forward.3} parent=31 // pred_region
          %s913 = smul.u32 16, %s48
          %p914 = scmp.lt.s32.totalorder %s913, 31
          %s915 = scalar_select %p914, %s913, 31
          %s916 = smul.addr %s915, 8
          %s917 = scalar_lea.vmem %s11, %s916
          %s918 = smul.u32 16, %s48
        $region136: #{sdr_forward.3} parent=31 // pred_fallthru
          _
      $region32: #{sdr_forward.3} parent=5 // pred_fallthru
        _
      %p919 = scmp.le.s32.totalorder 1, %s48
      %p920 = scmp.lt.s32.totalorder %s48, 3
      %p921 = pnand %p919, %p920
      %p922 = pneg %p921
      // Predicated region
      $region137: #{sdr_forward.3} parent=5 // pred_check
        _
      $region138: #{sdr_forward.3} parent=5 // pred_check_branch
        %924 = sbr.rel (%p921) target = $region140
      $region139: #{sdr_forward.3} parent=5 // pred_region
        %s925 = ssub.s32 %s48, 1
        %s926 = sand.u32 %s82, 1
        %s927 = sand.u32 %s82, 1
        %s928 = smul.addr %s927, 128
        %s929 = scalar_lea.vmem [#allocation3], %s928
        // Predicated region
        $region141: #{sdr_forward.3} parent=139 // pred_check
          %p930 = pneg %p95
        $region142: #{sdr_forward.3} parent=139 // pred_check_branch
          %932 = sbr.rel (%p930) target = $region144
        $region143: #{sdr_forward.3} parent=139 // pred_region
          _
        $region144: #{sdr_forward.3} parent=139 // pred_fallthru
          _
        %s933 = sand.u32 %s181, 1
        %s934 = scalar_lea.sflag [#allocation5], %s933
        %s935 = sand.u32 %s181, 1
        %s936 = smul.addr %s935, 128
        %s937 = scalar_lea.vmem [#allocation4], %s936
        // Predicated region
        $region145: #{sdr_forward.3} parent=139 // pred_check
          %p938 = pneg %p194
        $region146: #{sdr_forward.3} parent=139 // pred_check_branch
          %940 = sbr.rel (%p938) target = $region148
        $region147: #{sdr_forward.3} parent=139 // pred_region
          %942 = dma.done %s934, 2048
        $region148: #{sdr_forward.3} parent=139 // pred_fallthru
          _
        %s943 = sand.u32 %s53, 1
        %s944 = scalar_lea.sflag [#allocation8], %s943
        %s945 = sand.u32 %s207, 1
        %s946 = scalar_lea.vmem [#allocation7], %s945
        // Predicated region
        $region149: #{sdr_forward.3} parent=139 // pred_check
          %p947 = pneg %p220
        $region150: #{sdr_forward.3} parent=139 // pred_check_branch
          %949 = sbr.rel (%p947) target = $region152
        $region151: #{sdr_forward.3} parent=139 // pred_region
          %951 = dma.done %s944, 16
        $region152: #{sdr_forward.3} parent=139 // pred_fallthru
          _
        %s952 = sand.u32 %s53, 1
        %s953 = scalar_lea.sflag [#allocation8], %s952
        %s954 = sand.u32 %s233, 1
        %s955 = smul.addr %s954, 128
        %s956 = scalar_lea.vmem [#allocation9], %s955
        // Predicated region
        $region153: #{sdr_forward.3} parent=139 // pred_check
          %p957 = pneg %p246
        $region154: #{sdr_forward.3} parent=139 // pred_check_branch
          %959 = sbr.rel (%p957) target = $region156
        $region155: #{sdr_forward.3} parent=139 // pred_region
          %961 = dma.done %s953, 2048
        $region156: #{sdr_forward.3} parent=139 // pred_fallthru
          _
        // Predicated region
        $region157: #{sdr_forward.3} parent=139 // pred_check
          %p962 = pneg %p267
        $region158: #{sdr_forward.3} parent=139 // pred_check_branch
          %964 = sbr.rel (%p962) target = $region160
        $region159: #{sdr_forward.3} parent=139 // pred_region
          %966 = dma.done [#allocation11], 16
        $region160: #{sdr_forward.3} parent=139 // pred_fallthru
          _
        %s967 = sand.u32 %s280, 1
        %s968 = sand.u32 %s280, 1
        %s969 = smul.addr %s968, 128
        %s970 = scalar_lea.vmem [#allocation12], %s969
        // Predicated region
        $region161: #{sdr_forward.3} parent=139 // pred_check
          %p971 = pneg %p293
        $region162: #{sdr_forward.3} parent=139 // pred_check_branch
          %973 = sbr.rel (%p971) target = $region164
        $region163: #{sdr_forward.3} parent=139 // pred_region
          _
        $region164: #{sdr_forward.3} parent=139 // pred_fallthru
          _
        %p974 = pneg %p69
        %p975 = pneg %p66
        %s976 = sand.u32 %s82, 1
        %s977 = sand.u32 %s82, 1
        %s978 = smul.addr %s977, 128
        %s979 = scalar_lea.vmem [#allocation3], %s978
        %p980 = pneg %p95
        %p981 = pneg %p92
        %p982 = scmp.lt.s32.totalorder %s53, 1
        %s983 = scalar_select %p982, %s53, 1
        %s984 = scalar_lea.vmem %s2, %s983
        %p985 = pneg %p121
        %p986 = pneg %p118
        %s987 = smul.u32 16, %s53
        %p988 = scmp.lt.s32.totalorder %s987, 31
        %s989 = scalar_select %p988, %s987, 31
        %s990 = smul.addr %s989, 8
        %s991 = scalar_lea.vmem %s3, %s990
        %p992 = pneg %p147
        %p993 = pneg %p144
        %p994 = pneg %p168
        %p995 = pneg %p165
        %s996 = sand.u32 %s181, 1
        %s997 = scalar_lea.sflag [#allocation5], %s996
        %s998 = sand.u32 %s181, 1
        %s999 = smul.addr %s998, 128
        %s1000 = scalar_lea.vmem [#allocation4], %s999
        %p1001 = pneg %p194
        %p1002 = pneg %p191
        %s1003 = sand.u32 %s53, 1
        %s1004 = scalar_lea.sflag [#allocation8], %s1003
        %s1005 = sand.u32 %s207, 1
        %s1006 = scalar_lea.vmem [#allocation7], %s1005
        %p1007 = pneg %p220
        %p1008 = pneg %p217
        %s1009 = sand.u32 %s53, 1
        %s1010 = scalar_lea.sflag [#allocation8], %s1009
        %s1011 = sand.u32 %s233, 1
        %s1012 = smul.addr %s1011, 128
        %s1013 = scalar_lea.vmem [#allocation9], %s1012
        %p1014 = pneg %p246
        %p1015 = pneg %p243
        %p1016 = pneg %p267
        %p1017 = pneg %p264
        %s1018 = sand.u32 %s280, 1
        %s1019 = sand.u32 %s280, 1
        %s1020 = smul.addr %s1019, 128
        %s1021 = scalar_lea.vmem [#allocation12], %s1020
        %p1022 = pneg %p293
        %p1023 = pneg %p290
        %p1024 = scmp.lt.s32.totalorder %s53, 1
        %s1025 = scalar_select %p1024, %s53, 1
        %s1026 = scalar_lea.vmem %s10, %s1025
        %p1027 = pneg %p319
        %p1028 = pneg %p316
        %s1029 = smul.u32 16, %s53
        %p1030 = scmp.lt.s32.totalorder %s1029, 31
        %s1031 = scalar_select %p1030, %s1029, 31
        %s1032 = smul.addr %s1031, 8
        %s1033 = scalar_lea.vmem %s11, %s1032
        %p1034 = pneg %p345
        %p1035 = pneg %p342
        %p1036 = pneg %p366
        %p1037 = pneg %p363
        %p1038 = pneg %p387
        %p1039 = pneg %p384
        %p1040 = pneg %p413
        %p1041 = pneg %p410
        %s1042 = sand.u32 %s53, 1
        %s1043 = scalar_lea.sflag [#allocation15], %s1042
        %s1044 = sand.u32 %s400, 1
        %s1045 = smul.addr %s1044, 128
        %s1046 = scalar_lea.vmem [#allocation14], %s1045
        %p1047 = pneg %p439
        %p1048 = pneg %p436
        %s1049 = sand.u32 %s53, 1
        %s1050 = scalar_lea.sflag [#allocation15], %s1049
        %s1051 = sand.u32 %s426, 1
        %s1052 = scalar_lea.vmem [#allocation16], %s1051
        %p1053 = pneg %p465
        %p1054 = pneg %p462
        %s1055 = sand.u32 %s53, 1
        %s1056 = scalar_lea.sflag [#allocation18], %s1055
        %s1057 = sand.u32 %s452, 1
        %s1058 = smul.addr %s1057, 128
        %s1059 = scalar_lea.vmem [#allocation17], %s1058
        %p1060 = pneg %p486
        %p1061 = pneg %p483
        %p1062 = pneg %p512
        %p1063 = pneg %p509
        %s1064 = sand.u32 %s53, 1
        %s1065 = scalar_lea.sflag [#allocation21], %s1064
        %s1066 = sand.u32 %s499, 1
        %s1067 = smul.addr %s1066, 128
        %s1068 = scalar_lea.vmem [#allocation20], %s1067
        %p1069 = pneg %p538
        %p1070 = pneg %p535
        %s1071 = sand.u32 %s53, 1
        %s1072 = scalar_lea.sflag [#allocation21], %s1071
        %s1073 = sand.u32 %s525, 1
        %s1074 = scalar_lea.vmem [#allocation22], %s1073
        %p1075 = pneg %p564
        %p1076 = pneg %p561
        %s1077 = sand.u32 %s53, 1
        %s1078 = scalar_lea.sflag [#allocation24], %s1077
        %s1079 = sand.u32 %s551, 1
        %s1080 = smul.addr %s1079, 128
        %s1081 = scalar_lea.vmem [#allocation23], %s1080
        %p1082 = pneg %p585
        %p1083 = pneg %p582
        %p1084 = scmp.lt.s32.totalorder %s53, 1
        %s1085 = scalar_select %p1084, %s53, 1
        %s1086 = scalar_lea.vmem %s2, %s1085
        %s1087 = smul.u32 16, %s53
        %p1088 = scmp.lt.s32.totalorder %s1087, 31
        %s1089 = scalar_select %p1088, %s1087, 31
        %s1090 = smul.addr %s1089, 8
        %s1091 = scalar_lea.vmem %s3, %s1090
        %s1092 = smul.u32 16, %s53
        %s1093 = smul.u32 16, %s53
        %p1094 = scmp.lt.s32.totalorder %s53, 1
        %s1095 = scalar_select %p1094, %s53, 1
        %s1096 = scalar_lea.vmem %s10, %s1095
        %s1097 = smul.u32 16, %s53
        %p1098 = scmp.lt.s32.totalorder %s1097, 31
        %s1099 = scalar_select %p1098, %s1097, 31
        %s1100 = smul.addr %s1099, 8
        %s1101 = scalar_lea.vmem %s11, %s1100
        %s1102 = smul.u32 16, %s53
        %s1103 = smul.u32 16, %s53
        %s1104 = smul.u32 16, %s53
        %v1105 = vld [vmem:[%s937] sm:$0xff]
        %v1106 = vld [vmem:[%s937 + $0x8] sm:$0xff]
        %v1107 = vld [vmem:[%s937 + $0x10] sm:$0xff]
        %v1108 = vld [vmem:[%s937 + $0x18] sm:$0xff]
        %v1109 = vld [vmem:[%s937 + $0x20] sm:$0xff]
        %v1110 = vld [vmem:[%s937 + $0x28] sm:$0xff]
        %v1111 = vld [vmem:[%s937 + $0x30] sm:$0xff]
        %v1112 = vld [vmem:[%s937 + $0x38] sm:$0xff]
        %v1113 = vld [vmem:[%s937 + $0x40] sm:$0xff]
        %v1114 = vld [vmem:[%s937 + $0x48] sm:$0xff]
        %v1115 = vld [vmem:[%s937 + $0x50] sm:$0xff]
        %v1116 = vld [vmem:[%s937 + $0x58] sm:$0xff]
        %v1117 = vld [vmem:[%s937 + $0x60] sm:$0xff]
        %v1118 = vld [vmem:[%s937 + $0x68] sm:$0xff]
        %v1119 = vld [vmem:[%s937 + $0x70] sm:$0xff]
        %v1120 = vld [vmem:[%s937 + $0x78] sm:$0xff]
        %v1121 = vmul.f32 %v1105, 0.8019
        %v1122 = vmul.f32 %v1106, 0.8019
        %v1123 = vmul.f32 %v1107, 0.8019
        %v1124 = vmul.f32 %v1108, 0.8019
        %v1125 = vmul.f32 %v1109, 0.8019
        %v1126 = vmul.f32 %v1110, 0.8019
        %v1127 = vmul.f32 %v1111, 0.8019
        %v1128 = vmul.f32 %v1112, 0.8019
        %v1129 = vmul.f32 %v1113, 0.8019
        %v1130 = vmul.f32 %v1114, 0.8019
        %v1131 = vmul.f32 %v1115, 0.8019
        %v1132 = vmul.f32 %v1116, 0.8019
        %v1133 = vmul.f32 %v1117, 0.8019
        %v1134 = vmul.f32 %v1118, 0.8019
        %v1135 = vmul.f32 %v1119, 0.8019
        %v1136 = vmul.f32 %v1120, 0.8019
        %v1137 = vld [vmem:[%s946] sm:$0x1]
        %v1138 = vmul.f32 %v1137, 0.891
        %v1139 = vld [vmem:[%s956] sm:$0xff]
        %v1140 = vld [vmem:[%s956 + $0x8] sm:$0xff]
        %v1141 = vld [vmem:[%s956 + $0x10] sm:$0xff]
        %v1142 = vld [vmem:[%s956 + $0x18] sm:$0xff]
        %v1143 = vld [vmem:[%s956 + $0x20] sm:$0xff]
        %v1144 = vld [vmem:[%s956 + $0x28] sm:$0xff]
        %v1145 = vld [vmem:[%s956 + $0x30] sm:$0xff]
        %v1146 = vld [vmem:[%s956 + $0x38] sm:$0xff]
        %v1147 = vld [vmem:[%s956 + $0x40] sm:$0xff]
        %v1148 = vld [vmem:[%s956 + $0x48] sm:$0xff]
        %v1149 = vld [vmem:[%s956 + $0x50] sm:$0xff]
        %v1150 = vld [vmem:[%s956 + $0x58] sm:$0xff]
        %v1151 = vld [vmem:[%s956 + $0x60] sm:$0xff]
        %v1152 = vld [vmem:[%s956 + $0x68] sm:$0xff]
        %v1153 = vld [vmem:[%s956 + $0x70] sm:$0xff]
        %v1154 = vld [vmem:[%s956 + $0x78] sm:$0xff]
        %v1155 = vmul.f32 %v1139, 0.891
        %v1156 = vmul.f32 %v1140, 0.891
        %v1157 = vmul.f32 %v1141, 0.891
        %v1158 = vmul.f32 %v1142, 0.891
        %v1159 = vmul.f32 %v1143, 0.891
        %v1160 = vmul.f32 %v1144, 0.891
        %v1161 = vmul.f32 %v1145, 0.891
        %v1162 = vmul.f32 %v1146, 0.891
        %v1163 = vmul.f32 %v1147, 0.891
        %v1164 = vmul.f32 %v1148, 0.891
        %v1165 = vmul.f32 %v1149, 0.891
        %v1166 = vmul.f32 %v1150, 0.891
        %v1167 = vmul.f32 %v1151, 0.891
        %v1168 = vmul.f32 %v1152, 0.891
        %v1169 = vmul.f32 %v1153, 0.891
        %v1170 = vmul.f32 %v1154, 0.891
        %v1171 = vld [vmem:[#allocation10] sm:$0x1]
        %v1172 = vmul.f32 %v1171, 0.99
        %1173 = vst [vmem:[%s1046] sm:$0xff] %v1121
        %1174 = vst [vmem:[%s1046 + $0x8] sm:$0xff] %v1122
        %1175 = vst [vmem:[%s1046 + $0x10] sm:$0xff] %v1123
        %1176 = vst [vmem:[%s1046 + $0x18] sm:$0xff] %v1124
        %1177 = vst [vmem:[%s1046 + $0x20] sm:$0xff] %v1125
        %1178 = vst [vmem:[%s1046 + $0x28] sm:$0xff] %v1126
        %1179 = vst [vmem:[%s1046 + $0x30] sm:$0xff] %v1127
        %1180 = vst [vmem:[%s1046 + $0x38] sm:$0xff] %v1128
        %1181 = vst [vmem:[%s1046 + $0x40] sm:$0xff] %v1129
        %1182 = vst [vmem:[%s1046 + $0x48] sm:$0xff] %v1130
        %1183 = vst [vmem:[%s1046 + $0x50] sm:$0xff] %v1131
        %1184 = vst [vmem:[%s1046 + $0x58] sm:$0xff] %v1132
        %1185 = vst [vmem:[%s1046 + $0x60] sm:$0xff] %v1133
        %1186 = vst [vmem:[%s1046 + $0x68] sm:$0xff] %v1134
        %1187 = vst [vmem:[%s1046 + $0x70] sm:$0xff] %v1135
        %1188 = vst [vmem:[%s1046 + $0x78] sm:$0xff] %v1136
        %1189 = vst [vmem:[%s1052] sm:$0x1] %v1138
        %1190 = vst [vmem:[%s1059] sm:$0xff] %v1155
        %1191 = vst [vmem:[%s1059 + $0x8] sm:$0xff] %v1156
        %1192 = vst [vmem:[%s1059 + $0x10] sm:$0xff] %v1157
        %1193 = vst [vmem:[%s1059 + $0x18] sm:$0xff] %v1158
        %1194 = vst [vmem:[%s1059 + $0x20] sm:$0xff] %v1159
        %1195 = vst [vmem:[%s1059 + $0x28] sm:$0xff] %v1160
        %1196 = vst [vmem:[%s1059 + $0x30] sm:$0xff] %v1161
        %1197 = vst [vmem:[%s1059 + $0x38] sm:$0xff] %v1162
        %1198 = vst [vmem:[%s1059 + $0x40] sm:$0xff] %v1163
        %1199 = vst [vmem:[%s1059 + $0x48] sm:$0xff] %v1164
        %1200 = vst [vmem:[%s1059 + $0x50] sm:$0xff] %v1165
        %1201 = vst [vmem:[%s1059 + $0x58] sm:$0xff] %v1166
        %1202 = vst [vmem:[%s1059 + $0x60] sm:$0xff] %v1167
        %1203 = vst [vmem:[%s1059 + $0x68] sm:$0xff] %v1168
        %1204 = vst [vmem:[%s1059 + $0x70] sm:$0xff] %v1169
        %1205 = vst [vmem:[%s1059 + $0x78] sm:$0xff] %v1170
        %1206 = vst [vmem:[#allocation19] sm:$0x1] %v1172
        %v1207 = vld [vmem:[%s929] sm:$0xff]
        %v1208 = vld [vmem:[%s929 + $0x8] sm:$0xff]
        %v1209 = vld [vmem:[%s929 + $0x10] sm:$0xff]
        %v1210 = vld [vmem:[%s929 + $0x18] sm:$0xff]
        %v1211 = vld [vmem:[%s929 + $0x20] sm:$0xff]
        %v1212 = vld [vmem:[%s929 + $0x28] sm:$0xff]
        %v1213 = vld [vmem:[%s929 + $0x30] sm:$0xff]
        %v1214 = vld [vmem:[%s929 + $0x38] sm:$0xff]
        %v1215 = vld [vmem:[%s929 + $0x40] sm:$0xff]
        %v1216 = vld [vmem:[%s929 + $0x48] sm:$0xff]
        %v1217 = vld [vmem:[%s929 + $0x50] sm:$0xff]
        %v1218 = vld [vmem:[%s929 + $0x58] sm:$0xff]
        %v1219 = vld [vmem:[%s929 + $0x60] sm:$0xff]
        %v1220 = vld [vmem:[%s929 + $0x68] sm:$0xff]
        %v1221 = vld [vmem:[%s929 + $0x70] sm:$0xff]
        %v1222 = vld [vmem:[%s929 + $0x78] sm:$0xff]
        %v1223 = vld [vmem:[%s970] sm:$0xff]
        %v1224 = vld [vmem:[%s970 + $0x8] sm:$0xff]
        %v1225 = vld [vmem:[%s970 + $0x10] sm:$0xff]
        %v1226 = vld [vmem:[%s970 + $0x18] sm:$0xff]
        %v1227 = vld [vmem:[%s970 + $0x20] sm:$0xff]
        %v1228 = vld [vmem:[%s970 + $0x28] sm:$0xff]
        %v1229 = vld [vmem:[%s970 + $0x30] sm:$0xff]
        %v1230 = vld [vmem:[%s970 + $0x38] sm:$0xff]
        %v1231 = vld [vmem:[%s970 + $0x40] sm:$0xff]
        %v1232 = vld [vmem:[%s970 + $0x48] sm:$0xff]
        %v1233 = vld [vmem:[%s970 + $0x50] sm:$0xff]
        %v1234 = vld [vmem:[%s970 + $0x58] sm:$0xff]
        %v1235 = vld [vmem:[%s970 + $0x60] sm:$0xff]
        %v1236 = vld [vmem:[%s970 + $0x68] sm:$0xff]
        %v1237 = vld [vmem:[%s970 + $0x70] sm:$0xff]
        %v1238 = vld [vmem:[%s970 + $0x78] sm:$0xff]
        %v1239 = vmul.f32 %v1121, %v1223
        %v1240 = vmul.f32 %v1122, %v1224
        %v1241 = vmul.f32 %v1123, %v1225
        %v1242 = vmul.f32 %v1124, %v1226
        %v1243 = vmul.f32 %v1125, %v1227
        %v1244 = vmul.f32 %v1126, %v1228
        %v1245 = vmul.f32 %v1127, %v1229
        %v1246 = vmul.f32 %v1128, %v1230
        %v1247 = vmul.f32 %v1129, %v1231
        %v1248 = vmul.f32 %v1130, %v1232
        %v1249 = vmul.f32 %v1131, %v1233
        %v1250 = vmul.f32 %v1132, %v1234
        %v1251 = vmul.f32 %v1133, %v1235
        %v1252 = vmul.f32 %v1134, %v1236
        %v1253 = vmul.f32 %v1135, %v1237
        %v1254 = vmul.f32 %v1136, %v1238
        %v1255 = vadd.f32 %v1207, %v1239
        %v1256 = vadd.f32 %v1208, %v1240
        %v1257 = vadd.f32 %v1209, %v1241
        %v1258 = vadd.f32 %v1210, %v1242
        %v1259 = vadd.f32 %v1211, %v1243
        %v1260 = vadd.f32 %v1212, %v1244
        %v1261 = vadd.f32 %v1213, %v1245
        %v1262 = vadd.f32 %v1214, %v1246
        %v1263 = vadd.f32 %v1215, %v1247
        %v1264 = vadd.f32 %v1216, %v1248
        %v1265 = vadd.f32 %v1217, %v1249
        %v1266 = vadd.f32 %v1218, %v1250
        %v1267 = vadd.f32 %v1219, %v1251
        %v1268 = vadd.f32 %v1220, %v1252
        %v1269 = vadd.f32 %v1221, %v1253
        %v1270 = vadd.f32 %v1222, %v1254
        %v1271 = vld [vmem:[%s1086] sm:$0x1]
        %v1272 = vld [vmem:[%s1096] sm:$0x1]
        %v1273 = vmul.f32 %v1138, %v1272
        %v1274 = vadd.f32 %v1271, %v1273
        %v1275 = vld [vmem:[%s1091] sm:$0xff]
        %v1276 = vld [vmem:[%s1091 + $0x8] sm:$0xff]
        %v1277 = vld [vmem:[%s1091 + $0x10] sm:$0xff]
        %v1278 = vld [vmem:[%s1091 + $0x18] sm:$0xff]
        %v1279 = vld [vmem:[%s1091 + $0x20] sm:$0xff]
        %v1280 = vld [vmem:[%s1091 + $0x28] sm:$0xff]
        %v1281 = vld [vmem:[%s1091 + $0x30] sm:$0xff]
        %v1282 = vld [vmem:[%s1091 + $0x38] sm:$0xff]
        %v1283 = vld [vmem:[%s1091 + $0x40] sm:$0xff]
        %v1284 = vld [vmem:[%s1091 + $0x48] sm:$0xff]
        %v1285 = vld [vmem:[%s1091 + $0x50] sm:$0xff]
        %v1286 = vld [vmem:[%s1091 + $0x58] sm:$0xff]
        %v1287 = vld [vmem:[%s1091 + $0x60] sm:$0xff]
        %v1288 = vld [vmem:[%s1091 + $0x68] sm:$0xff]
        %v1289 = vld [vmem:[%s1091 + $0x70] sm:$0xff]
        %v1290 = vld [vmem:[%s1091 + $0x78] sm:$0xff]
        %v1291 = vld [vmem:[%s1101] sm:$0xff]
        %v1292 = vld [vmem:[%s1101 + $0x8] sm:$0xff]
        %v1293 = vld [vmem:[%s1101 + $0x10] sm:$0xff]
        %v1294 = vld [vmem:[%s1101 + $0x18] sm:$0xff]
        %v1295 = vld [vmem:[%s1101 + $0x20] sm:$0xff]
        %v1296 = vld [vmem:[%s1101 + $0x28] sm:$0xff]
        %v1297 = vld [vmem:[%s1101 + $0x30] sm:$0xff]
        %v1298 = vld [vmem:[%s1101 + $0x38] sm:$0xff]
        %v1299 = vld [vmem:[%s1101 + $0x40] sm:$0xff]
        %v1300 = vld [vmem:[%s1101 + $0x48] sm:$0xff]
        %v1301 = vld [vmem:[%s1101 + $0x50] sm:$0xff]
        %v1302 = vld [vmem:[%s1101 + $0x58] sm:$0xff]
        %v1303 = vld [vmem:[%s1101 + $0x60] sm:$0xff]
        %v1304 = vld [vmem:[%s1101 + $0x68] sm:$0xff]
        %v1305 = vld [vmem:[%s1101 + $0x70] sm:$0xff]
        %v1306 = vld [vmem:[%s1101 + $0x78] sm:$0xff]
        %v1307 = vmul.f32 %v1155, %v1291
        %v1308 = vmul.f32 %v1156, %v1292
        %v1309 = vmul.f32 %v1157, %v1293
        %v1310 = vmul.f32 %v1158, %v1294
        %v1311 = vmul.f32 %v1159, %v1295
        %v1312 = vmul.f32 %v1160, %v1296
        %v1313 = vmul.f32 %v1161, %v1297
        %v1314 = vmul.f32 %v1162, %v1298
        %v1315 = vmul.f32 %v1163, %v1299
        %v1316 = vmul.f32 %v1164, %v1300
        %v1317 = vmul.f32 %v1165, %v1301
        %v1318 = vmul.f32 %v1166, %v1302
        %v1319 = vmul.f32 %v1167, %v1303
        %v1320 = vmul.f32 %v1168, %v1304
        %v1321 = vmul.f32 %v1169, %v1305
        %v1322 = vmul.f32 %v1170, %v1306
        %v1323 = vadd.f32 %v1275, %v1307
        %v1324 = vadd.f32 %v1276, %v1308
        %v1325 = vadd.f32 %v1277, %v1309
        %v1326 = vadd.f32 %v1278, %v1310
        %v1327 = vadd.f32 %v1279, %v1311
        %v1328 = vadd.f32 %v1280, %v1312
        %v1329 = vadd.f32 %v1281, %v1313
        %v1330 = vadd.f32 %v1282, %v1314
        %v1331 = vadd.f32 %v1283, %v1315
        %v1332 = vadd.f32 %v1284, %v1316
        %v1333 = vadd.f32 %v1285, %v1317
        %v1334 = vadd.f32 %v1286, %v1318
        %v1335 = vadd.f32 %v1287, %v1319
        %v1336 = vadd.f32 %v1288, %v1320
        %v1337 = vadd.f32 %v1289, %v1321
        %v1338 = vadd.f32 %v1290, %v1322
        %1339 = vst [vmem:[%s1068] sm:$0xff] %v1255
        %1340 = vst [vmem:[%s1068 + $0x8] sm:$0xff] %v1256
        %1341 = vst [vmem:[%s1068 + $0x10] sm:$0xff] %v1257
        %1342 = vst [vmem:[%s1068 + $0x18] sm:$0xff] %v1258
        %1343 = vst [vmem:[%s1068 + $0x20] sm:$0xff] %v1259
        %1344 = vst [vmem:[%s1068 + $0x28] sm:$0xff] %v1260
        %1345 = vst [vmem:[%s1068 + $0x30] sm:$0xff] %v1261
        %1346 = vst [vmem:[%s1068 + $0x38] sm:$0xff] %v1262
        %1347 = vst [vmem:[%s1068 + $0x40] sm:$0xff] %v1263
        %1348 = vst [vmem:[%s1068 + $0x48] sm:$0xff] %v1264
        %1349 = vst [vmem:[%s1068 + $0x50] sm:$0xff] %v1265
        %1350 = vst [vmem:[%s1068 + $0x58] sm:$0xff] %v1266
        %1351 = vst [vmem:[%s1068 + $0x60] sm:$0xff] %v1267
        %1352 = vst [vmem:[%s1068 + $0x68] sm:$0xff] %v1268
        %1353 = vst [vmem:[%s1068 + $0x70] sm:$0xff] %v1269
        %1354 = vst [vmem:[%s1068 + $0x78] sm:$0xff] %v1270
        %1355 = vst [vmem:[%s1074] sm:$0x1] %v1274
        %1356 = vst [vmem:[%s1081] sm:$0xff] %v1323
        %1357 = vst [vmem:[%s1081 + $0x8] sm:$0xff] %v1324
        %1358 = vst [vmem:[%s1081 + $0x10] sm:$0xff] %v1325
        %1359 = vst [vmem:[%s1081 + $0x18] sm:$0xff] %v1326
        %1360 = vst [vmem:[%s1081 + $0x20] sm:$0xff] %v1327
        %1361 = vst [vmem:[%s1081 + $0x28] sm:$0xff] %v1328
        %1362 = vst [vmem:[%s1081 + $0x30] sm:$0xff] %v1329
        %1363 = vst [vmem:[%s1081 + $0x38] sm:$0xff] %v1330
        %1364 = vst [vmem:[%s1081 + $0x40] sm:$0xff] %v1331
        %1365 = vst [vmem:[%s1081 + $0x48] sm:$0xff] %v1332
        %1366 = vst [vmem:[%s1081 + $0x50] sm:$0xff] %v1333
        %1367 = vst [vmem:[%s1081 + $0x58] sm:$0xff] %v1334
        %1368 = vst [vmem:[%s1081 + $0x60] sm:$0xff] %v1335
        %1369 = vst [vmem:[%s1081 + $0x68] sm:$0xff] %v1336
        %1370 = vst [vmem:[%s1081 + $0x70] sm:$0xff] %v1337
        %1371 = vst [vmem:[%s1081 + $0x78] sm:$0xff] %v1338
        %p1372 = scmp.eq.s32.totalorder %s53, 0
        // Predicated region
        $region165: #{sdr_forward.3} parent=139 // pred_check
          %p1373 = pneg %p1372
        $region166: #{sdr_forward.3} parent=139 // pred_check_branch
          %1375 = sbr.rel (%p1373) target = $region168
        $region167: #{sdr_forward.3} parent=139 // pred_region
          %1376 = vst [vmem:[#allocation2] sm:$0xff] 0.0
        $region168: #{sdr_forward.3} parent=139 // pred_fallthru
          _
        %v1377 = vld [vmem:[%s0] sm:$0xff]
        %v1378 = vpack.c.bf16 %v1377, %v1377
        %v1379 = vpack.c.bf16 %v1256, %v1255
        %v1380 = vpack.c.bf16 %v1258, %v1257
        %v1381 = vpack.c.bf16 %v1260, %v1259
        %v1382 = vpack.c.bf16 %v1262, %v1261
        %v1383 = vpack.c.bf16 %v1264, %v1263
        %v1384 = vpack.c.bf16 %v1266, %v1265
        %v1385 = vpack.c.bf16 %v1268, %v1267
        %v1386 = vpack.c.bf16 %v1270, %v1269
        %v1388 = vperm.slane %v1274, 0
        %1390 = vmatpush.bf16.msra.mxu0 %v1386
        %1391 = vmatpush.bf16.msra.mxu0 %v1385
        %1392 = vmatpush.bf16.msra.mxu0 %v1384
        %1393 = vmatpush.bf16.msra.mxu0 %v1383
        %1394 = vmatpush.bf16.msra.mxu0 %v1382
        %1395 = vmatpush.bf16.msra.mxu0 %v1381
        %1396 = vmatpush.bf16.msra.mxu0 %v1380
        %1397 = vmatpush.bf16.msra.mxu0 %v1379
        %1398 = vmatmul.bf16.gmra.mxu0 %v1378
        %v1399 = vpop.f32.mrf.mxu0
        %v1400 = vadd.f32 %v1388, %v1399
        %v1401 = vpop.f32.mrf.mxu0
        %1402 = vdwg.mxu0
        %v1403 = vmax.f32 %v1400, 0.0
        %v1404 = vld [vmem:[#allocation2] sm:$0xff]
        %v1405 = vpack.c.bf16 %v1403, %v1403
        %v1406 = vpack.c.bf16 %v1324, %v1323
        %v1407 = vpack.c.bf16 %v1326, %v1325
        %v1408 = vpack.c.bf16 %v1328, %v1327
        %v1409 = vpack.c.bf16 %v1330, %v1329
        %v1410 = vpack.c.bf16 %v1332, %v1331
        %v1411 = vpack.c.bf16 %v1334, %v1333
        %v1412 = vpack.c.bf16 %v1336, %v1335
        %v1413 = vpack.c.bf16 %v1338, %v1337
        %1414 = vmatpush.bf16.msra.mxu0 %v1413
        %1415 = vmatpush.bf16.msra.mxu0 %v1412
        %1416 = vmatpush.bf16.msra.mxu0 %v1411
        %1417 = vmatpush.bf16.msra.mxu0 %v1410
        %1418 = vmatpush.bf16.msra.mxu0 %v1409
        %1419 = vmatpush.bf16.msra.mxu0 %v1408
        %1420 = vmatpush.bf16.msra.mxu0 %v1407
        %1421 = vmatpush.bf16.msra.mxu0 %v1406
        %1422 = vmatmul.bf16.gmra.mxu0 %v1405
        %v1423 = vpop.f32.mrf.mxu0
        %v1424 = vadd.f32 0.0, %v1423
        %v1425 = vpop.f32.mrf.mxu0
        %1426 = vdwg.mxu0
        %v1427 = vadd.f32 %v1404, %v1424
        %1428 = vst [vmem:[#allocation2] sm:$0xff] %v1427
        %p1429 = scmp.eq.s32.totalorder %s53, 1
        // Predicated region
        $region169: #{sdr_forward.3} parent=139 // pred_check
          %p1430 = pneg %p1429
        $region170: #{sdr_forward.3} parent=139 // pred_check_branch
          %1432 = sbr.rel (%p1430) target = $region172
        $region171: #{sdr_forward.3} parent=139 // pred_region
          %v1433 = vld [vmem:[%s4] sm:$0x1]
          %v1434 = vld [vmem:[%s12] sm:$0x1]
          %v1435 = vmul.f32 %v1172, %v1434
          %v1436 = vadd.f32 %v1433, %v1435
          %1437 = vst [vmem:[#allocation25] sm:$0x1] %v1436
          %v1438 = vld [vmem:[#allocation2] sm:$0xff]
          %v1440 = vperm.slane %v1436, 0
          %v1442 = vadd.f32 %v1438, %v1440
          %1443 = vst [vmem:[#allocation13] sm:$0xff] %v1442
        $region172: #{sdr_forward.3} parent=139 // pred_fallthru
          _
        %s1444 = sand.u32 %s53, 1
        %s1445 = scalar_lea.sflag [#allocation15], %s1444
        %s1446 = sand.u32 %s400, 1
        %s1447 = smul.addr %s1446, 128
        %s1448 = scalar_lea.vmem [#allocation14], %s1447
        %s1449 = sand.u32 %s53, 1
        %s1450 = scalar_lea.sflag [#allocation15], %s1449
        %s1451 = sand.u32 %s426, 1
        %s1452 = scalar_lea.vmem [#allocation16], %s1451
        %s1453 = sand.u32 %s53, 1
        %s1454 = scalar_lea.sflag [#allocation18], %s1453
        %s1455 = sand.u32 %s452, 1
        %s1456 = smul.addr %s1455, 128
        %s1457 = scalar_lea.vmem [#allocation17], %s1456
        %s1458 = sand.u32 %s53, 1
        %s1459 = scalar_lea.sflag [#allocation21], %s1458
        %s1460 = sand.u32 %s499, 1
        %s1461 = smul.addr %s1460, 128
        %s1462 = scalar_lea.vmem [#allocation20], %s1461
        %s1463 = sand.u32 %s53, 1
        %s1464 = scalar_lea.sflag [#allocation21], %s1463
        %s1465 = sand.u32 %s525, 1
        %s1466 = scalar_lea.vmem [#allocation22], %s1465
        %s1467 = sand.u32 %s53, 1
        %s1468 = scalar_lea.sflag [#allocation24], %s1467
        %s1469 = sand.u32 %s551, 1
        %s1470 = smul.addr %s1469, 128
        %s1471 = scalar_lea.vmem [#allocation23], %s1470
        // Predicated region
        $region173: #{sdr_forward.3} parent=139 // pred_check
          %p1472 = pneg %p384
        $region174: #{sdr_forward.3} parent=139 // pred_check_branch
          %1474 = sbr.rel (%p1472) target = $region176
        $region175: #{sdr_forward.3} parent=139 // pred_region
          %1476 = vsyncadd [#allocation6], 0
          %s1478 = sshll.u32 [#allocation13], 4
          %s1479 = int_to_ptr.vmem [resolvable:$true] %s1478
          %s1480 = sshll.u32 %s13, 4
          %s1481 = int_to_ptr.hbm [resolvable:$true] %s1480
          %1483 = dma.vmem_to_hbm [thread:$0]  %s1479, 128, %s1481, [#allocation6]
        $region176: #{sdr_forward.3} parent=139 // pred_fallthru
          _
        // Predicated region
        $region177: #{sdr_forward.3} parent=139 // pred_check
          %p1484 = pneg %p410
        $region178: #{sdr_forward.3} parent=139 // pred_check_branch
          %1486 = sbr.rel (%p1484) target = $region180
        $region179: #{sdr_forward.3} parent=139 // pred_region
          %1488 = vsyncadd %s1445, 0
          %s1489 = smul.addr %s53, 8
          %s1490 = scalar_lea.hbm %s14, %s1489
          %s1491 = sshll.u32 %s1448, 4
          %s1492 = int_to_ptr.vmem [resolvable:$true] %s1491
          %s1493 = sshll.u32 %s1490, 4
          %s1494 = int_to_ptr.hbm [resolvable:$true] %s1493
          %1499 = dma.vmem_to_hbm [thread:$0]  %s1492, 2048, %s1494, %s1445, 128, 256, 8
        $region180: #{sdr_forward.3} parent=139 // pred_fallthru
          _
        // Predicated region
        $region181: #{sdr_forward.3} parent=139 // pred_check
          %p1500 = pneg %p436
        $region182: #{sdr_forward.3} parent=139 // pred_check_branch
          %1502 = sbr.rel (%p1500) target = $region184
        $region183: #{sdr_forward.3} parent=139 // pred_region
          %1504 = vsyncadd %s1450, 0
          %s1505 = scalar_lea.hbm %s15, %s53
          %s1507 = sshll.u32 %s1452, 4
          %s1508 = int_to_ptr.vmem [resolvable:$true] %s1507
          %s1509 = sshll.u32 %s1505, 4
          %s1510 = int_to_ptr.hbm [resolvable:$true] %s1509
          %1512 = dma.vmem_to_hbm [thread:$0]  %s1508, 16, %s1510, %s1450
        $region184: #{sdr_forward.3} parent=139 // pred_fallthru
          _
        // Predicated region
        $region185: #{sdr_forward.3} parent=139 // pred_check
          %p1513 = pneg %p462
        $region186: #{sdr_forward.3} parent=139 // pred_check_branch
          %1515 = sbr.rel (%p1513) target = $region188
        $region187: #{sdr_forward.3} parent=139 // pred_region
          %s1516 = smul.u32 16, %s53
          %1518 = vsyncadd %s1454, 0
          %s1519 = smul.addr %s1516, 8
          %s1520 = scalar_lea.hbm %s16, %s1519
          %s1521 = sshll.u32 %s1457, 4
          %s1522 = int_to_ptr.vmem [resolvable:$true] %s1521
          %s1523 = sshll.u32 %s1520, 4
          %s1524 = int_to_ptr.hbm [resolvable:$true] %s1523
          %1529 = dma.vmem_to_hbm [thread:$0]  %s1522, 2048, %s1524, %s1454, 128, 128, 8
        $region188: #{sdr_forward.3} parent=139 // pred_fallthru
          _
        // Predicated region
        $region189: #{sdr_forward.3} parent=139 // pred_check
          %p1530 = pneg %p483
        $region190: #{sdr_forward.3} parent=139 // pred_check_branch
          %1532 = sbr.rel (%p1530) target = $region192
        $region191: #{sdr_forward.3} parent=139 // pred_region
          %1534 = vsyncadd [#allocation18], 0
          %s1536 = sshll.u32 [#allocation19], 4
          %s1537 = int_to_ptr.vmem [resolvable:$true] %s1536
          %s1538 = sshll.u32 %s17, 4
          %s1539 = int_to_ptr.hbm [resolvable:$true] %s1538
          %1541 = dma.vmem_to_hbm [thread:$0]  %s1537, 16, %s1539, [#allocation18]
        $region192: #{sdr_forward.3} parent=139 // pred_fallthru
          _
        // Predicated region
        $region193: #{sdr_forward.3} parent=139 // pred_check
          %p1542 = pneg %p509
        $region194: #{sdr_forward.3} parent=139 // pred_check_branch
          %1544 = sbr.rel (%p1542) target = $region196
        $region195: #{sdr_forward.3} parent=139 // pred_region
          %1546 = vsyncadd %s1459, 0
          %s1547 = smul.addr %s53, 8
          %s1548 = scalar_lea.hbm %s18, %s1547
          %s1549 = sshll.u32 %s1462, 4
          %s1550 = int_to_ptr.vmem [resolvable:$true] %s1549
          %s1551 = sshll.u32 %s1548, 4
          %s1552 = int_to_ptr.hbm [resolvable:$true] %s1551
          %1557 = dma.vmem_to_hbm [thread:$0]  %s1550, 2048, %s1552, %s1459, 128, 256, 8
        $region196: #{sdr_forward.3} parent=139 // pred_fallthru
          _
        // Predicated region
        $region197: #{sdr_forward.3} parent=139 // pred_check
          %p1558 = pneg %p535
        $region198: #{sdr_forward.3} parent=139 // pred_check_branch
          %1560 = sbr.rel (%p1558) target = $region200
        $region199: #{sdr_forward.3} parent=139 // pred_region
          %1562 = vsyncadd %s1464, 0
          %s1563 = scalar_lea.hbm %s19, %s53
          %s1565 = sshll.u32 %s1466, 4
          %s1566 = int_to_ptr.vmem [resolvable:$true] %s1565
          %s1567 = sshll.u32 %s1563, 4
          %s1568 = int_to_ptr.hbm [resolvable:$true] %s1567
          %1570 = dma.vmem_to_hbm [thread:$0]  %s1566, 16, %s1568, %s1464
        $region200: #{sdr_forward.3} parent=139 // pred_fallthru
          _
        // Predicated region
        $region201: #{sdr_forward.3} parent=139 // pred_check
          %p1571 = pneg %p561
        $region202: #{sdr_forward.3} parent=139 // pred_check_branch
          %1573 = sbr.rel (%p1571) target = $region204
        $region203: #{sdr_forward.3} parent=139 // pred_region
          %s1574 = smul.u32 16, %s53
          %1576 = vsyncadd %s1468, 0
          %s1577 = smul.addr %s1574, 8
          %s1578 = scalar_lea.hbm %s20, %s1577
          %s1579 = sshll.u32 %s1471, 4
          %s1580 = int_to_ptr.vmem [resolvable:$true] %s1579
          %s1581 = sshll.u32 %s1578, 4
          %s1582 = int_to_ptr.hbm [resolvable:$true] %s1581
          %1587 = dma.vmem_to_hbm [thread:$0]  %s1580, 2048, %s1582, %s1468, 128, 128, 8
        $region204: #{sdr_forward.3} parent=139 // pred_fallthru
          _
        // Predicated region
        $region205: #{sdr_forward.3} parent=139 // pred_check
          %p1588 = pneg %p582
        $region206: #{sdr_forward.3} parent=139 // pred_check_branch
          %1590 = sbr.rel (%p1588) target = $region208
        $region207: #{sdr_forward.3} parent=139 // pred_region
          %1592 = vsyncadd [#allocation24], 0
          %s1594 = sshll.u32 [#allocation25], 4
          %s1595 = int_to_ptr.vmem [resolvable:$true] %s1594
          %s1596 = sshll.u32 %s21, 4
          %s1597 = int_to_ptr.hbm [resolvable:$true] %s1596
          %1599 = dma.vmem_to_hbm [thread:$0]  %s1595, 16, %s1597, [#allocation24]
        $region208: #{sdr_forward.3} parent=139 // pred_fallthru
          _
        // Predicated region
        $region209: #{sdr_forward.3} parent=139 // pred_check
          %p1600 = pneg %p384
        $region210: #{sdr_forward.3} parent=139 // pred_check_branch
          %1602 = sbr.rel (%p1600) target = $region212
        $region211: #{sdr_forward.3} parent=139 // pred_region
          %1604 = dma.done [#allocation6], 128
        $region212: #{sdr_forward.3} parent=139 // pred_fallthru
          _
        // Predicated region
        $region213: #{sdr_forward.3} parent=139 // pred_check
          %p1605 = pneg %p483
        $region214: #{sdr_forward.3} parent=139 // pred_check_branch
          %1607 = sbr.rel (%p1605) target = $region216
        $region215: #{sdr_forward.3} parent=139 // pred_region
          %1609 = dma.done [#allocation18], 16
        $region216: #{sdr_forward.3} parent=139 // pred_fallthru
          _
        // Predicated region
        $region217: #{sdr_forward.3} parent=139 // pred_check
          %p1610 = pneg %p582
        $region218: #{sdr_forward.3} parent=139 // pred_check_branch
          %1612 = sbr.rel (%p1610) target = $region220
        $region219: #{sdr_forward.3} parent=139 // pred_region
          %1614 = dma.done [#allocation24], 16
        $region220: #{sdr_forward.3} parent=139 // pred_fallthru
          _
      $region140: #{sdr_forward.3} parent=5 // pred_fallthru
        _
      %p1615 = scmp.le.s32.totalorder 2, %s48
      // Predicated region
      $region221: #{sdr_forward.3} parent=5 // pred_check
        %p1616 = pneg %p1615
      $region222: #{sdr_forward.3} parent=5 // pred_check_branch
        %1618 = sbr.rel (%p1616) target = $region224
      $region223: #{sdr_forward.3} parent=5 // pred_region
        %s1619 = ssub.s32 %s48, 2
        // Predicated region
        $region225: #{sdr_forward.3} parent=223 // pred_check
          %p1620 = pneg %p416
        $region226: #{sdr_forward.3} parent=223 // pred_check_branch
          %1622 = sbr.rel (%p1620) target = $region228
        $region227: #{sdr_forward.3} parent=223 // pred_region
          %s1623 = sand.u32 %s54, 1
          %s1624 = scalar_lea.sflag [#allocation15], %s1623
          %s1625 = sand.u32 %s401, 1
          %s1626 = smul.addr %s1625, 128
          %s1627 = scalar_lea.vmem [#allocation14], %s1626
          %1629 = dma.done %s1624, 2048
        $region228: #{sdr_forward.3} parent=223 // pred_fallthru
          _
        // Predicated region
        $region229: #{sdr_forward.3} parent=223 // pred_check
          %p1630 = pneg %p442
        $region230: #{sdr_forward.3} parent=223 // pred_check_branch
          %1632 = sbr.rel (%p1630) target = $region232
        $region231: #{sdr_forward.3} parent=223 // pred_region
          %s1633 = sand.u32 %s54, 1
          %s1634 = scalar_lea.sflag [#allocation15], %s1633
          %s1635 = sand.u32 %s427, 1
          %s1636 = scalar_lea.vmem [#allocation16], %s1635
          %1638 = dma.done %s1634, 16
        $region232: #{sdr_forward.3} parent=223 // pred_fallthru
          _
        // Predicated region
        $region233: #{sdr_forward.3} parent=223 // pred_check
          %p1639 = pneg %p468
        $region234: #{sdr_forward.3} parent=223 // pred_check_branch
          %1641 = sbr.rel (%p1639) target = $region236
        $region235: #{sdr_forward.3} parent=223 // pred_region
          %s1642 = sand.u32 %s54, 1
          %s1643 = scalar_lea.sflag [#allocation18], %s1642
          %s1644 = sand.u32 %s453, 1
          %s1645 = smul.addr %s1644, 128
          %s1646 = scalar_lea.vmem [#allocation17], %s1645
          %1648 = dma.done %s1643, 2048
        $region236: #{sdr_forward.3} parent=223 // pred_fallthru
          _
        // Predicated region
        $region237: #{sdr_forward.3} parent=223 // pred_check
          %p1649 = pneg %p515
        $region238: #{sdr_forward.3} parent=223 // pred_check_branch
          %1651 = sbr.rel (%p1649) target = $region240
        $region239: #{sdr_forward.3} parent=223 // pred_region
          %s1652 = sand.u32 %s54, 1
          %s1653 = scalar_lea.sflag [#allocation21], %s1652
          %s1654 = sand.u32 %s500, 1
          %s1655 = smul.addr %s1654, 128
          %s1656 = scalar_lea.vmem [#allocation20], %s1655
          %1658 = dma.done %s1653, 2048
        $region240: #{sdr_forward.3} parent=223 // pred_fallthru
          _
        // Predicated region
        $region241: #{sdr_forward.3} parent=223 // pred_check
          %p1659 = pneg %p541
        $region242: #{sdr_forward.3} parent=223 // pred_check_branch
          %1661 = sbr.rel (%p1659) target = $region244
        $region243: #{sdr_forward.3} parent=223 // pred_region
          %s1662 = sand.u32 %s54, 1
          %s1663 = scalar_lea.sflag [#allocation21], %s1662
          %s1664 = sand.u32 %s526, 1
          %s1665 = scalar_lea.vmem [#allocation22], %s1664
          %1667 = dma.done %s1663, 16
        $region244: #{sdr_forward.3} parent=223 // pred_fallthru
          _
        // Predicated region
        $region245: #{sdr_forward.3} parent=223 // pred_check
          %p1668 = pneg %p567
        $region246: #{sdr_forward.3} parent=223 // pred_check_branch
          %1670 = sbr.rel (%p1668) target = $region248
        $region247: #{sdr_forward.3} parent=223 // pred_region
          %s1671 = sand.u32 %s54, 1
          %s1672 = scalar_lea.sflag [#allocation24], %s1671
          %s1673 = sand.u32 %s552, 1
          %s1674 = smul.addr %s1673, 128
          %s1675 = scalar_lea.vmem [#allocation23], %s1674
          %1677 = dma.done %s1672, 2048
        $region248: #{sdr_forward.3} parent=223 // pred_fallthru
          _
      $region224: #{sdr_forward.3} parent=5 // pred_fallthru
        _
    $region6: #{sdr_forward.3} parent=1 // loop_footer
      %s52 = sadd.s32 1, %s48
    $region7: #{sdr_forward.3} parent=1 // loop_footer_branch
      %47 = sbr.rel target = $region3
    $region8: #{sdr_forward.3} parent=1 // loop_exit
      _
    %1678 = vsyncpa [#allocation5], 1
    %s1679 = scalar_lea.sflag [#allocation5], 1
    %1680 = vsyncpa %s1679, 1
    %1681 = vsyncpa [#allocation8], 1
    %s1682 = scalar_lea.sflag [#allocation8], 1
    %1683 = vsyncpa %s1682, 1
    %1684 = vsyncpa [#allocation11], 1
    %1685 = vsyncpa [#allocation6], 1
    %s1686 = scalar_lea.sflag [#allocation6], 1
    %1687 = vsyncpa %s1686, 1
    %1688 = vsyncpa [#allocation15], 1
    %s1689 = scalar_lea.sflag [#allocation15], 1
    %1690 = vsyncpa %s1689, 1
    %1691 = vsyncpa [#allocation18], 1
    %s1692 = scalar_lea.sflag [#allocation18], 1
    %1693 = vsyncpa %s1692, 1
    %1694 = vsyncpa [#allocation21], 1
    %s1695 = scalar_lea.sflag [#allocation21], 1
    %1696 = vsyncpa %s1695, 1
    %1697 = vsyncpa [#allocation24], 1
    %s1698 = scalar_lea.sflag [#allocation24], 1
    %1699 = vsyncpa %s1698, 1

</llo_original>
